<compile_context>
chip_gen: v5e
topology: v5e:2x2
jax: 0.10.0
libtpu: 0.0.40
codegen_flags: <defaults>
</compile_context>

<pallas_src>
import math

import jax
import jax.numpy as jnp
from jax.experimental import pallas as pl
from jax.experimental.pallas import tpu as pltpu

# ----------------------- model hyper-parameters (small) ----------------------
B, S, D = 2, 8, 32          # batch, sequence length, d_model
NHEAD = 4
HEAD_DIM = D // NHEAD
FF = 64                     # dim_feedforward
NUM_LAYERS = 2
EPS = 1e-5
SCALE = 1.0 / math.sqrt(HEAD_DIM)
N = B * S                   # tokens, processed as one (N, D) slab
VEC_W = 3 * D               # lane width of the packed bias / LayerNorm slab
OUT_ROWS = (N * D) // 128   # lane-dense output rows
assert (N * D) % 128 == 0


# --------------------------------- kernel ------------------------------------
def _layernorm(x, w, b):
    # f32 element-wise math (mandatory on v5e: no bf16 VALU/EUP).
    mu = jnp.mean(x, axis=-1, keepdims=True)
    var = jnp.mean(jnp.square(x - mu), axis=-1, keepdims=True)
    return (x - mu) * jax.lax.rsqrt(var + EPS) * w + b


def encoder_stack_kernel(x_ref, wqkv_ref, wo_ref, w1_ref, w2_ref,
                         vecs_ref, fnorm_ref, out_ref, x_acc):
    l = pl.program_id(0)                               # layer index (grid axis)

    @pl.when(l == 0)
    def _():                                           # load activation once
        x_acc[...] = x_ref[...]

    x = x_acc[...]                                     # (N, D) f32, whole batch

    # Per-layer streamed weights (bf16) and packed biases / LN params (f32).
    wqkv = wqkv_ref[0]                                 # (D, 3D)  bf16
    wo = wo_ref[0]                                     # (D, D)   bf16
    w1 = w1_ref[0]                                     # (D, FF)  bf16
    w2 = w2_ref[0]                                     # (FF, D)  bf16
    vec = vecs_ref[0]                                  # (8, 3D)  f32
    bqkv = vec[0:1, :]                                 # (1, 3D)
    bo, b1, b2 = vec[1:2, :D], vec[2:3, :FF], vec[3:4, :D]
    ln1w, ln1b = vec[4:5, :D], vec[5:6, :D]
    ln2w, ln2b = vec[6:7, :D], vec[7:8, :D]

    # ---- fused QKV projection: one bf16 MXU push, f32 accumulate ----
    qkv = jnp.dot(x.astype(jnp.bfloat16), wqkv,
                  preferred_element_type=jnp.float32) + bqkv      # (N, 3D) f32
    qkv3 = qkv.reshape(B, S, 3 * D)                    # leading split (safe)

    # ---- gather heads into ONE merged (B*NHEAD) batch dim -> one batched
    #      dot_general for scores and one for values (no per-head matmuls) ----
    q_g = jnp.concatenate(
        [qkv3[:, :, h * HEAD_DIM:(h + 1) * HEAD_DIM] for h in range(NHEAD)], axis=0)
    k_g = jnp.concatenate(
        [qkv3[:, :, D + h * HEAD_DIM:D + (h + 1) * HEAD_DIM] for h in range(NHEAD)], axis=0)
    v_g = jnp.concatenate(
        [qkv3[:, :, 2 * D + h * HEAD_DIM:2 * D + (h + 1) * HEAD_DIM] for h in range(NHEAD)], axis=0)
    # q_g / k_g / v_g: (B*NHEAD, S, HEAD_DIM), head-major along the batch dim.

    s = jnp.einsum('gqd,gkd->gqk',
                   q_g.astype(jnp.bfloat16), k_g.astype(jnp.bfloat16),
                   preferred_element_type=jnp.float32) * SCALE    # (B*H, S, S) f32
    s = s - jnp.max(s, axis=-1, keepdims=True)
    p = jnp.exp(s)                                                # f32 EUP
    # softmax normalization on the EUP (approx reciprocal), not the VALU
    p = p * pl.reciprocal(jnp.sum(p, axis=-1, keepdims=True), approx=True)
    o_g = jnp.einsum('gqk,gkd->gqd',
                     p.astype(jnp.bfloat16), v_g.astype(jnp.bfloat16),
                     preferred_element_type=jnp.float32)          # (B*H, S, Hd) f32

    # heads back along the feature axis, then (B,S,D) -> (N,D)
    attn = jnp.concatenate([o_g[h * B:(h + 1) * B] for h in range(NHEAD)],
                           axis=-1).reshape(N, D)
    attn = jnp.dot(attn.astype(jnp.bfloat16), wo,
                   preferred_element_type=jnp.float32) + bo

    # ---- residual + LayerNorm 1 (f32) ----
    h1 = _layernorm(x + attn, ln1w, ln1b)

    # ---- feed-forward (linear -> ReLU -> linear), bf16 MXU / f32 accum ----
    f = jnp.maximum(jnp.dot(h1.astype(jnp.bfloat16), w1,
                            preferred_element_type=jnp.float32) + b1, 0.0)
    f = jnp.dot(f.astype(jnp.bfloat16), w2,
                preferred_element_type=jnp.float32) + b2

    # ---- residual + LayerNorm 2 (f32) -> carry to next layer ----
    x_new = _layernorm(h1 + f, ln2w, ln2b)
    x_acc[...] = x_new

    # ---- last layer: final LayerNorm + lane-dense store ----
    @pl.when(l == NUM_LAYERS - 1)
    def _():
        y = _layernorm(x_new, fnorm_ref[0:1, :], fnorm_ref[1:2, :])   # (N, D)
        # Repack (N, D) = (16, 32) -> (4, 128): fold 4 consecutive tokens into
        # the lane dimension so the single output store is lane-dense.
        y4 = y.reshape(N // 4, 4, D)                                  # token split
        rows = [jax.lax.index_in_dim(y4, j, axis=1, keepdims=False)   # (N//4, D)
                for j in range(4)]
        out_ref[...] = jnp.concatenate(rows, axis=-1)                 # (4, 128)


# ------------------------------ pallas wrapper --------------------------------
def transformer_encoder(src, packed):
    """Whole forward pass (all layers + final norm) in a single pallas_call."""
    xf = src.reshape(N, D)        # (B,S,D) -> (B*S,D): free XLA reshape outside
    args = (xf, packed['wqkv'], packed['wo'], packed['w1'], packed['w2'],
            packed['vecs'], packed['fnorm'])
    out = pl.pallas_call(
        encoder_stack_kernel,
        out_shape=jax.ShapeDtypeStruct((OUT_ROWS, 128), jnp.float32),
        grid=(NUM_LAYERS,),
        in_specs=[
            pl.BlockSpec((N, D), lambda l: (0, 0)),              # x: DMA'd once
            pl.BlockSpec((1, D, 3 * D), lambda l: (l, 0, 0)),    # wqkv (streamed)
            pl.BlockSpec((1, D, D), lambda l: (l, 0, 0)),        # wo
            pl.BlockSpec((1, D, FF), lambda l: (l, 0, 0)),       # w1
            pl.BlockSpec((1, FF, D), lambda l: (l, 0, 0)),       # w2
            pl.BlockSpec((1, 8, VEC_W), lambda l: (l, 0, 0)),    # biases / LN
            pl.BlockSpec((2, D), lambda l: (0, 0)),              # final norm
        ],
        out_specs=pl.BlockSpec((OUT_ROWS, 128), lambda l: (0, 0)),
        scratch_shapes=[pltpu.VMEM((N, D), jnp.float32)],        # carried activation
        compiler_params=pltpu.CompilerParams(
            dimension_semantics=("arbitrary",)),                 # layers sequential
    )(*args)
    return out.reshape(B, S, D)   # inverse of the lane-dense packing (row-major)


# ------------------------------ parameter init --------------------------------
def init_layer_params(key):
    ks = jax.random.split(key, 8)
    s = 0.1
    return dict(
        wq=s * jax.random.normal(ks[0], (D, D), jnp.float32),
        wk=s * jax.random.normal(ks[1], (D, D), jnp.float32),
        wv=s * jax.random.normal(ks[2], (D, D), jnp.float32),
        wo=s * jax.random.normal(ks[3], (D, D), jnp.float32),
        bq=jnp.zeros((D,), jnp.float32),
        bk=jnp.zeros((D,), jnp.float32),
        bv=jnp.zeros((D,), jnp.float32),
        bo=s * jax.random.normal(ks[4], (D,), jnp.float32),
        ln1w=jnp.ones((D,), jnp.float32),
        ln1b=jnp.zeros((D,), jnp.float32),
        w1=s * jax.random.normal(ks[5], (D, FF), jnp.float32),
        b1=s * jax.random.normal(ks[6], (FF,), jnp.float32),
        w2=s * jax.random.normal(ks[7], (FF, D), jnp.float32),
        b2=jnp.zeros((D,), jnp.float32),
        ln2w=jnp.ones((D,), jnp.float32),
        ln2b=jnp.zeros((D,), jnp.float32),
    )


def pack_params(layer_params, final_norm):
    """Consolidate per-layer arrays into a few slabs; weights stored in bf16."""
    def row(v):
        v = v.reshape(1, -1)
        return jnp.pad(v, ((0, 0), (0, VEC_W - v.shape[1])))

    wqkv = jnp.stack([jnp.concatenate([p['wq'], p['wk'], p['wv']], axis=1)
                      for p in layer_params]).astype(jnp.bfloat16)   # (L, D, 3D)
    wo = jnp.stack([p['wo'] for p in layer_params]).astype(jnp.bfloat16)
    w1 = jnp.stack([p['w1'] for p in layer_params]).astype(jnp.bfloat16)
    w2 = jnp.stack([p['w2'] for p in layer_params]).astype(jnp.bfloat16)
    vecs = jnp.stack([
        jnp.concatenate([
            row(jnp.concatenate([p['bq'], p['bk'], p['bv']])),
            row(p['bo']), row(p['b1']), row(p['b2']),
            row(p['ln1w']), row(p['ln1b']), row(p['ln2w']), row(p['ln2b']),
        ], axis=0)
        for p in layer_params])                                      # (L, 8, 3D) f32
    fnorm = jnp.stack([final_norm[0], final_norm[1]])                # (2, D) f32
    return dict(wqkv=wqkv, wo=wo, w1=w1, w2=w2, vecs=vecs, fnorm=fnorm)


# ------------------------------ pure-JAX reference -----------------------------
def ref_layer(x, p):
    def ln(y, w, b):
        mu = jnp.mean(y, axis=-1, keepdims=True)
        var = jnp.mean((y - mu) ** 2, axis=-1, keepdims=True)
        return (y - mu) * jax.lax.rsqrt(var + EPS) * w + b

    q = x @ p['wq'] + p['bq']
    k = x @ p['wk'] + p['bk']
    v = x @ p['wv'] + p['bv']
    qh = q.reshape(B, S, NHEAD, HEAD_DIM).transpose(0, 2, 1, 3)
    kh = k.reshape(B, S, NHEAD, HEAD_DIM).transpose(0, 2, 1, 3)
    vh = v.reshape(B, S, NHEAD, HEAD_DIM).transpose(0, 2, 1, 3)
    s = jnp.einsum('bhqd,bhkd->bhqk', qh, kh) / math.sqrt(HEAD_DIM)
    a = jax.nn.softmax(s, axis=-1)
    o = jnp.einsum('bhqk,bhkd->bhqd', a, vh).transpose(0, 2, 1, 3).reshape(B, S, D)
    attn = o @ p['wo'] + p['bo']
    h1 = ln(x + attn, p['ln1w'], p['ln1b'])
    f = jnp.maximum(h1 @ p['w1'] + p['b1'], 0.0) @ p['w2'] + p['b2']
    return ln(h1 + f, p['ln2w'], p['ln2b'])


def ref_encoder(x, layer_params, final_norm):
    out = x
    for p in layer_params:
        out = ref_layer(out, p)
    w, b = final_norm
    mu = jnp.mean(out, axis=-1, keepdims=True)
    var = jnp.mean((out - mu) ** 2, axis=-1, keepdims=True)
    return (out - mu) * jax.lax.rsqrt(var + EPS) * w + b


# ----------------------------------- main --------------------------------------
if __name__ == "__main__":
    key = jax.random.PRNGKey(0)
    k_src, k_fn, *k_layers = jax.random.split(key, 2 + NUM_LAYERS)

    src = jax.random.normal(k_src, (B, S, D), jnp.float32)
    layer_params = [init_layer_params(k) for k in k_layers]
    final_norm = (1.0 + 0.1 * jax.random.normal(k_fn, (D,), jnp.float32),
                  jnp.zeros((D,), jnp.float32))
    packed = pack_params(layer_params, final_norm)

    out = transformer_encoder(src, packed)
    out = jax.block_until_ready(out)

    ref = ref_encoder(src, layer_params, final_norm)
    assert out.shape == (B, S, D)
    # tolerance accounts for bf16 MXU operands (~2^-9 per operand, 2 layers of
    # matmuls) plus pl.reciprocal(approx=True) in the softmax (~1e-3 rel.);
    # element-wise LayerNorm/softmax math and all accumulations stay f32.
    assert jnp.allclose(out, ref, atol=4e-2, rtol=4e-2), "mismatch vs JAX reference"

    print("KERNEL_OK")
</pallas_src>

<mosaic_0001>
module attributes {stable_mosaic.version = 11 : i64} {
  func.func @encoder_stack_kernel(%arg0: i32, %arg1: memref<16x32xf32, #tpu.memory_space<vmem>>, %arg2: memref<1x32x96xbf16, #tpu.memory_space<vmem>>, %arg3: memref<1x32x32xbf16, #tpu.memory_space<vmem>>, %arg4: memref<1x32x64xbf16, #tpu.memory_space<vmem>>, %arg5: memref<1x64x32xbf16, #tpu.memory_space<vmem>>, %arg6: memref<1x8x96xf32, #tpu.memory_space<vmem>>, %arg7: memref<2x32xf32, #tpu.memory_space<vmem>>, %arg8: memref<4x128xf32, #tpu.memory_space<vmem>>, %arg9: memref<16x32xf32, #tpu.memory_space<vmem>>) attributes {dimension_semantics = [#tpu.dimension_semantics<arbitrary>], iteration_bounds = array<i64: 2>, scalar_prefetch = 0 : i64, scratch_operands = 1 : i64, tpu.core_type = #tpu.core_type<tc>, window_params = [{pipeline_mode = #tpu.pipeline_mode<synchronous>, transform_indices = @transform_0, window_bounds = array<i64: 16, 32>}, {transform_indices = @transform_1, window_bounds = array<i64: 1, 32, 96>}, {transform_indices = @transform_2, window_bounds = array<i64: 1, 32, 32>}, {transform_indices = @transform_3, window_bounds = array<i64: 1, 32, 64>}, {transform_indices = @transform_4, window_bounds = array<i64: 1, 64, 32>}, {transform_indices = @transform_5, window_bounds = array<i64: 1, 8, 96>}, {pipeline_mode = #tpu.pipeline_mode<synchronous>, transform_indices = @transform_6, window_bounds = array<i64: 2, 32>}, {pipeline_mode = #tpu.pipeline_mode<synchronous>, transform_indices = @transform_7, window_bounds = array<i64: 4, 128>}]} {
    %c0_i32 = arith.constant 0 : i32
    %0 = arith.cmpi eq, %arg0, %c0_i32 : i32
    %1 = arith.extui %0 : i1 to i32
    %c0_i32_0 = arith.constant 0 : i32
    %2 = arith.cmpi ne, %1, %c0_i32_0 : i32
    scf.if %2 {
      %c0_39 = arith.constant 0 : index
      %c0_40 = arith.constant 0 : index
      %130 = vector.load %arg1[%c0_39, %c0_40] : memref<16x32xf32, #tpu.memory_space<vmem>>, vector<16x32xf32>
      %c0_41 = arith.constant 0 : index
      %c0_42 = arith.constant 0 : index
      %131 = vector.load %arg9[%c0_41, %c0_42] : memref<16x32xf32, #tpu.memory_space<vmem>>, vector<16x32xf32>
      tpu.vector_store %arg9[%c0_41, %c0_42], %130 {strides = array<i32>} : memref<16x32xf32, #tpu.memory_space<vmem>>, vector<16x32xf32>,
    } else {
    }
    %c0 = arith.constant 0 : index
    %c0_1 = arith.constant 0 : index
    %3 = vector.load %arg9[%c0, %c0_1] : memref<16x32xf32, #tpu.memory_space<vmem>>, vector<16x32xf32>
    %c0_2 = arith.constant 0 : index
    %c0_3 = arith.constant 0 : index
    %c0_4 = arith.constant 0 : index
    %4 = vector.load %arg2[%c0_2, %c0_3, %c0_4] : memref<1x32x96xbf16, #tpu.memory_space<vmem>>, vector<1x32x96xbf16>
    %5 = vector.shape_cast %4 : vector<1x32x96xbf16> to vector<32x96xbf16>
    %c0_5 = arith.constant 0 : index
    %c0_6 = arith.constant 0 : index
    %c0_7 = arith.constant 0 : index
    %6 = vector.load %arg3[%c0_5, %c0_6, %c0_7] : memref<1x32x32xbf16, #tpu.memory_space<vmem>>, vector<1x32x32xbf16>
    %7 = vector.shape_cast %6 : vector<1x32x32xbf16> to vector<32x32xbf16>
    %c0_8 = arith.constant 0 : index
    %c0_9 = arith.constant 0 : index
    %c0_10 = arith.constant 0 : index
    %8 = vector.load %arg4[%c0_8, %c0_9, %c0_10] : memref<1x32x64xbf16, #tpu.memory_space<vmem>>, vector<1x32x64xbf16>
    %9 = vector.shape_cast %8 : vector<1x32x64xbf16> to vector<32x64xbf16>
    %c0_11 = arith.constant 0 : index
    %c0_12 = arith.constant 0 : index
    %c0_13 = arith.constant 0 : index
    %10 = vector.load %arg5[%c0_11, %c0_12, %c0_13] : memref<1x64x32xbf16, #tpu.memory_space<vmem>>, vector<1x64x32xbf16>
    %11 = vector.shape_cast %10 : vector<1x64x32xbf16> to vector<64x32xbf16>
    %c0_14 = arith.constant 0 : index
    %c0_15 = arith.constant 0 : index
    %c0_16 = arith.constant 0 : index
    %12 = vector.load %arg6[%c0_14, %c0_15, %c0_16] : memref<1x8x96xf32, #tpu.memory_space<vmem>>, vector<1x8x96xf32>
    %13 = vector.shape_cast %12 : vector<1x8x96xf32> to vector<8x96xf32>
    %14 = vector.extract_strided_slice %13 {offsets = [0, 0], sizes = [1, 96], strides = [1, 1]} : vector<8x96xf32> to vector<1x96xf32>
    %15 = vector.extract_strided_slice %13 {offsets = [1, 0], sizes = [1, 32], strides = [1, 1]} : vector<8x96xf32> to vector<1x32xf32>
    %16 = vector.extract_strided_slice %13 {offsets = [2, 0], sizes = [1, 64], strides = [1, 1]} : vector<8x96xf32> to vector<1x64xf32>
    %17 = vector.extract_strided_slice %13 {offsets = [3, 0], sizes = [1, 32], strides = [1, 1]} : vector<8x96xf32> to vector<1x32xf32>
    %18 = vector.extract_strided_slice %13 {offsets = [4, 0], sizes = [1, 32], strides = [1, 1]} : vector<8x96xf32> to vector<1x32xf32>
    %19 = vector.extract_strided_slice %13 {offsets = [5, 0], sizes = [1, 32], strides = [1, 1]} : vector<8x96xf32> to vector<1x32xf32>
    %20 = vector.extract_strided_slice %13 {offsets = [6, 0], sizes = [1, 32], strides = [1, 1]} : vector<8x96xf32> to vector<1x32xf32>
    %21 = vector.extract_strided_slice %13 {offsets = [7, 0], sizes = [1, 32], strides = [1, 1]} : vector<8x96xf32> to vector<1x32xf32>
    %22 = arith.truncf %3 : vector<16x32xf32> to vector<16x32xbf16>
    %cst = arith.constant dense<0.000000e+00> : vector<16x96xf32>
    %23 = tpu.matmul %22, %5, %cst {dimension_numbers = #tpu.dot_dimension_numbers<[1], [0], [0], [1], [0, 0, 1, 1], [], []>} : vector<16x32xbf16>, vector<32x96xbf16>, vector<16x96xf32> -> vector<16x96xf32>
    %24 = vector.broadcast %14 : vector<1x96xf32> to vector<16x96xf32>
    %25 = arith.addf %23, %24 : vector<16x96xf32>
    %26 = vector.shape_cast %25 : vector<16x96xf32> to vector<2x8x96xf32>
    %27 = vector.extract_strided_slice %26 {offsets = [0, 0, 0], sizes = [2, 8, 8], strides = [1, 1, 1]} : vector<2x8x96xf32> to vector<2x8x8xf32>
    %28 = vector.extract_strided_slice %26 {offsets = [0, 0, 8], sizes = [2, 8, 8], strides = [1, 1, 1]} : vector<2x8x96xf32> to vector<2x8x8xf32>
    %29 = vector.extract_strided_slice %26 {offsets = [0, 0, 16], sizes = [2, 8, 8], strides = [1, 1, 1]} : vector<2x8x96xf32> to vector<2x8x8xf32>
    %30 = vector.extract_strided_slice %26 {offsets = [0, 0, 24], sizes = [2, 8, 8], strides = [1, 1, 1]} : vector<2x8x96xf32> to vector<2x8x8xf32>
    %31 = tpu.concatenate %27, %28, %29, %30 in 0 : vector<2x8x8xf32>, vector<2x8x8xf32>, vector<2x8x8xf32>, vector<2x8x8xf32> -> vector<8x8x8xf32>
    %32 = vector.extract_strided_slice %26 {offsets = [0, 0, 32], sizes = [2, 8, 8], strides = [1, 1, 1]} : vector<2x8x96xf32> to vector<2x8x8xf32>
    %33 = vector.extract_strided_slice %26 {offsets = [0, 0, 40], sizes = [2, 8, 8], strides = [1, 1, 1]} : vector<2x8x96xf32> to vector<2x8x8xf32>
    %34 = vector.extract_strided_slice %26 {offsets = [0, 0, 48], sizes = [2, 8, 8], strides = [1, 1, 1]} : vector<2x8x96xf32> to vector<2x8x8xf32>
    %35 = vector.extract_strided_slice %26 {offsets = [0, 0, 56], sizes = [2, 8, 8], strides = [1, 1, 1]} : vector<2x8x96xf32> to vector<2x8x8xf32>
    %36 = tpu.concatenate %32, %33, %34, %35 in 0 : vector<2x8x8xf32>, vector<2x8x8xf32>, vector<2x8x8xf32>, vector<2x8x8xf32> -> vector<8x8x8xf32>
    %37 = vector.extract_strided_slice %26 {offsets = [0, 0, 64], sizes = [2, 8, 8], strides = [1, 1, 1]} : vector<2x8x96xf32> to vector<2x8x8xf32>
    %38 = vector.extract_strided_slice %26 {offsets = [0, 0, 72], sizes = [2, 8, 8], strides = [1, 1, 1]} : vector<2x8x96xf32> to vector<2x8x8xf32>
    %39 = vector.extract_strided_slice %26 {offsets = [0, 0, 80], sizes = [2, 8, 8], strides = [1, 1, 1]} : vector<2x8x96xf32> to vector<2x8x8xf32>
    %40 = vector.extract_strided_slice %26 {offsets = [0, 0, 88], sizes = [2, 8, 8], strides = [1, 1, 1]} : vector<2x8x96xf32> to vector<2x8x8xf32>
    %41 = tpu.concatenate %37, %38, %39, %40 in 0 : vector<2x8x8xf32>, vector<2x8x8xf32>, vector<2x8x8xf32>, vector<2x8x8xf32> -> vector<8x8x8xf32>
    %42 = arith.truncf %31 : vector<8x8x8xf32> to vector<8x8x8xbf16>
    %43 = arith.truncf %36 : vector<8x8x8xf32> to vector<8x8x8xbf16>
    "tpu.trace_start"() <{level = 10 : i32, message = "gqd,gkd->gqk"}> : () -> ()
    %cst_17 = arith.constant dense<0.000000e+00> : vector<8x8x8xf32>
    %44 = tpu.matmul %42, %43, %cst_17 {dimension_numbers = #tpu.dot_dimension_numbers<[2], [2], [1], [1], [0, 0, 0, 1, 1, 1], [0], [0]>} : vector<8x8x8xbf16>, vector<8x8x8xbf16>, vector<8x8x8xf32> -> vector<8x8x8xf32>
    "tpu.trace_stop"() : () -> ()
    %cst_18 = arith.constant 0.353553385 : f32
    %45 = vector.broadcast %cst_18 : f32 to vector<8x8x8xf32>
    %46 = arith.mulf %44, %45 : vector<8x8x8xf32>
    %cst_19 = arith.constant dense<0xFF800000> : vector<8x8xf32>
    %47 = vector.multi_reduction <maximumf>, %46, %cst_19 [2] : vector<8x8x8xf32> to vector<8x8xf32>
    %48 = vector.shape_cast %47 : vector<8x8xf32> to vector<8x8x1xf32>
    %49 = vector.broadcast %48 : vector<8x8x1xf32> to vector<8x8x8xf32>
    %50 = arith.subf %46, %49 : vector<8x8x8xf32>
    %51 = math.exp %50 : vector<8x8x8xf32>
    %cst_20 = arith.constant dense<0.000000e+00> : vector<8x8xf32>
    %52 = vector.multi_reduction <add>, %51, %cst_20 [2] : vector<8x8x8xf32> to vector<8x8xf32>
    %53 = vector.shape_cast %52 : vector<8x8xf32> to vector<8x8x1xf32>
    %54 = tpu.reciprocal %53 {approx = true} : vector<8x8x1xf32> -> vector<8x8x1xf32>
    %55 = vector.broadcast %54 : vector<8x8x1xf32> to vector<8x8x8xf32>
    %56 = arith.mulf %51, %55 : vector<8x8x8xf32>
    %57 = arith.truncf %56 : vector<8x8x8xf32> to vector<8x8x8xbf16>
    %58 = arith.truncf %41 : vector<8x8x8xf32> to vector<8x8x8xbf16>
    "tpu.trace_start"() <{level = 10 : i32, message = "gqk,gkd->gqd"}> : () -> ()
    %cst_21 = arith.constant dense<0.000000e+00> : vector<8x8x8xf32>
    %59 = tpu.matmul %57, %58, %cst_21 {dimension_numbers = #tpu.dot_dimension_numbers<[2], [1], [1], [2], [0, 0, 0, 1, 1, 2], [0], [0]>} : vector<8x8x8xbf16>, vector<8x8x8xbf16>, vector<8x8x8xf32> -> vector<8x8x8xf32>
    "tpu.trace_stop"() : () -> ()
    %60 = vector.extract_strided_slice %59 {offsets = [0, 0, 0], sizes = [2, 8, 8], strides = [1, 1, 1]} : vector<8x8x8xf32> to vector<2x8x8xf32>
    %61 = vector.extract_strided_slice %59 {offsets = [2, 0, 0], sizes = [2, 8, 8], strides = [1, 1, 1]} : vector<8x8x8xf32> to vector<2x8x8xf32>
    %62 = vector.extract_strided_slice %59 {offsets = [4, 0, 0], sizes = [2, 8, 8], strides = [1, 1, 1]} : vector<8x8x8xf32> to vector<2x8x8xf32>
    %63 = vector.extract_strided_slice %59 {offsets = [6, 0, 0], sizes = [2, 8, 8], strides = [1, 1, 1]} : vector<8x8x8xf32> to vector<2x8x8xf32>
    %64 = tpu.concatenate %60, %61, %62, %63 in 2 : vector<2x8x8xf32>, vector<2x8x8xf32>, vector<2x8x8xf32>, vector<2x8x8xf32> -> vector<2x8x32xf32>
    %65 = vector.shape_cast %64 : vector<2x8x32xf32> to vector<16x32xf32>
    %66 = arith.truncf %65 : vector<16x32xf32> to vector<16x32xbf16>
    %cst_22 = arith.constant dense<0.000000e+00> : vector<16x32xf32>
    %67 = tpu.matmul %66, %7, %cst_22 {dimension_numbers = #tpu.dot_dimension_numbers<[1], [0], [0], [1], [0, 0, 1, 1], [], []>} : vector<16x32xbf16>, vector<32x32xbf16>, vector<16x32xf32> -> vector<16x32xf32>
    %68 = vector.broadcast %15 : vector<1x32xf32> to vector<16x32xf32>
    %69 = arith.addf %67, %68 : vector<16x32xf32>
    %70 = arith.addf %3, %69 : vector<16x32xf32>
    %cst_23 = arith.constant dense<0.000000e+00> : vector<16xf32>
    %71 = vector.multi_reduction <add>, %70, %cst_23 [1] : vector<16x32xf32> to vector<16xf32>
    %72 = vector.shape_cast %71 : vector<16xf32> to vector<16x1xf32>
    %cst_24 = arith.constant 3.200000e+01 : f32
    %73 = vector.broadcast %cst_24 : f32 to vector<16x1xf32>
    %74 = arith.divf %72, %73 : vector<16x1xf32>
    %75 = vector.broadcast %74 : vector<16x1xf32> to vector<16x32xf32>
    %76 = arith.subf %70, %75 : vector<16x32xf32>
    %77 = arith.mulf %76, %76 : vector<16x32xf32>
    %cst_25 = arith.constant dense<0.000000e+00> : vector<16xf32>
    %78 = vector.multi_reduction <add>, %77, %cst_25 [1] : vector<16x32xf32> to vector<16xf32>
    %79 = vector.shape_cast %78 : vector<16xf32> to vector<16x1xf32>
    %cst_26 = arith.constant 3.200000e+01 : f32
    %80 = vector.broadcast %cst_26 : f32 to vector<16x1xf32>
    %81 = arith.divf %79, %80 : vector<16x1xf32>
    %82 = vector.broadcast %74 : vector<16x1xf32> to vector<16x32xf32>
    %83 = arith.subf %70, %82 : vector<16x32xf32>
    %cst_27 = arith.constant 9.99999974E-6 : f32
    %84 = vector.broadcast %cst_27 : f32 to vector<16x1xf32>
    %85 = arith.addf %81, %84 : vector<16x1xf32>
    %86 = math.rsqrt %85 : vector<16x1xf32>
    %87 = vector.broadcast %86 : vector<16x1xf32> to vector<16x32xf32>
    %88 = arith.mulf %83, %87 : vector<16x32xf32>
    %89 = vector.broadcast %18 : vector<1x32xf32> to vector<16x32xf32>
    %90 = arith.mulf %88, %89 : vector<16x32xf32>
    %91 = vector.broadcast %19 : vector<1x32xf32> to vector<16x32xf32>
    %92 = arith.addf %90, %91 : vector<16x32xf32>
    %93 = arith.truncf %92 : vector<16x32xf32> to vector<16x32xbf16>
    %cst_28 = arith.constant dense<0.000000e+00> : vector<16x64xf32>
    %94 = tpu.matmul %93, %9, %cst_28 {dimension_numbers = #tpu.dot_dimension_numbers<[1], [0], [0], [1], [0, 0, 1, 1], [], []>} : vector<16x32xbf16>, vector<32x64xbf16>, vector<16x64xf32> -> vector<16x64xf32>
    %95 = vector.broadcast %16 : vector<1x64xf32> to vector<16x64xf32>
    %96 = arith.addf %94, %95 : vector<16x64xf32>
    %cst_29 = arith.constant 0.000000e+00 : f32
    %97 = vector.broadcast %cst_29 : f32 to vector<16x64xf32>
    %98 = arith.maximumf %96, %97 : vector<16x64xf32>
    %99 = arith.truncf %98 : vector<16x64xf32> to vector<16x64xbf16>
    %cst_30 = arith.constant dense<0.000000e+00> : vector<16x32xf32>
    %100 = tpu.matmul %99, %11, %cst_30 {dimension_numbers = #tpu.dot_dimension_numbers<[1], [0], [0], [1], [0, 0, 1, 1], [], []>} : vector<16x64xbf16>, vector<64x32xbf16>, vector<16x32xf32> -> vector<16x32xf32>
    %101 = vector.broadcast %17 : vector<1x32xf32> to vector<16x32xf32>
    %102 = arith.addf %100, %101 : vector<16x32xf32>
    %103 = arith.addf %92, %102 : vector<16x32xf32>
    %cst_31 = arith.constant dense<0.000000e+00> : vector<16xf32>
    %104 = vector.multi_reduction <add>, %103, %cst_31 [1] : vector<16x32xf32> to vector<16xf32>
    %105 = vector.shape_cast %104 : vector<16xf32> to vector<16x1xf32>
    %cst_32 = arith.constant 3.200000e+01 : f32
    %106 = vector.broadcast %cst_32 : f32 to vector<16x1xf32>
    %107 = arith.divf %105, %106 : vector<16x1xf32>
    %108 = vector.broadcast %107 : vector<16x1xf32> to vector<16x32xf32>
    %109 = arith.subf %103, %108 : vector<16x32xf32>
    %110 = arith.mulf %109, %109 : vector<16x32xf32>
    %cst_33 = arith.constant dense<0.000000e+00> : vector<16xf32>
    %111 = vector.multi_reduction <add>, %110, %cst_33 [1] : vector<16x32xf32> to vector<16xf32>
    %112 = vector.shape_cast %111 : vector<16xf32> to vector<16x1xf32>
    %cst_34 = arith.constant 3.200000e+01 : f32
    %113 = vector.broadcast %cst_34 : f32 to vector<16x1xf32>
    %114 = arith.divf %112, %113 : vector<16x1xf32>
    %115 = vector.broadcast %107 : vector<16x1xf32> to vector<16x32xf32>
    %116 = arith.subf %103, %115 : vector<16x32xf32>
    %cst_35 = arith.constant 9.99999974E-6 : f32
    %117 = vector.broadcast %cst_35 : f32 to vector<16x1xf32>
    %118 = arith.addf %114, %117 : vector<16x1xf32>
    %119 = math.rsqrt %118 : vector<16x1xf32>
    %120 = vector.broadcast %119 : vector<16x1xf32> to vector<16x32xf32>
    %121 = arith.mulf %116, %120 : vector<16x32xf32>
    %122 = vector.broadcast %20 : vector<1x32xf32> to vector<16x32xf32>
    %123 = arith.mulf %121, %122 : vector<16x32xf32>
    %124 = vector.broadcast %21 : vector<1x32xf32> to vector<16x32xf32>
    %125 = arith.addf %123, %124 : vector<16x32xf32>
    %c0_36 = arith.constant 0 : index
    %c0_37 = arith.constant 0 : index
    %126 = vector.load %arg9[%c0_36, %c0_37] : memref<16x32xf32, #tpu.memory_space<vmem>>, vector<16x32xf32>
    tpu.vector_store %arg9[%c0_36, %c0_37], %125 {strides = array<i32>} : memref<16x32xf32, #tpu.memory_space<vmem>>, vector<16x32xf32>,
    %c1_i32 = arith.constant 1 : i32
    %127 = arith.cmpi eq, %arg0, %c1_i32 : i32
    %128 = arith.extui %127 : i1 to i32
    %c0_i32_38 = arith.constant 0 : i32
    %129 = arith.cmpi ne, %128, %c0_i32_38 : i32
    scf.if %129 {
      %c0_39 = arith.constant 0 : index
      %c0_40 = arith.constant 0 : index
      %130 = vector.load %arg7[%c0_39, %c0_40] : memref<2x32xf32, #tpu.memory_space<vmem>>, vector<1x32xf32>
      %c1 = arith.constant 1 : index
      %c0_41 = arith.constant 0 : index
      %131 = vector.load %arg7[%c1, %c0_41] : memref<2x32xf32, #tpu.memory_space<vmem>>, vector<1x32xf32>
      %cst_42 = arith.constant dense<0.000000e+00> : vector<16xf32>
      %132 = vector.multi_reduction <add>, %125, %cst_42 [1] : vector<16x32xf32> to vector<16xf32>
      %133 = vector.shape_cast %132 : vector<16xf32> to vector<16x1xf32>
      %cst_43 = arith.constant 3.200000e+01 : f32
      %134 = vector.broadcast %cst_43 : f32 to vector<16x1xf32>
      %135 = arith.divf %133, %134 : vector<16x1xf32>
      %136 = vector.broadcast %135 : vector<16x1xf32> to vector<16x32xf32>
      %137 = arith.subf %125, %136 : vector<16x32xf32>
      %138 = arith.mulf %137, %137 : vector<16x32xf32>
      %cst_44 = arith.constant dense<0.000000e+00> : vector<16xf32>
      %139 = vector.multi_reduction <add>, %138, %cst_44 [1] : vector<16x32xf32> to vector<16xf32>
      %140 = vector.shape_cast %139 : vector<16xf32> to vector<16x1xf32>
      %cst_45 = arith.constant 3.200000e+01 : f32
      %141 = vector.broadcast %cst_45 : f32 to vector<16x1xf32>
      %142 = arith.divf %140, %141 : vector<16x1xf32>
      %143 = vector.broadcast %135 : vector<16x1xf32> to vector<16x32xf32>
      %144 = arith.subf %125, %143 : vector<16x32xf32>
      %cst_46 = arith.constant 9.99999974E-6 : f32
      %145 = vector.broadcast %cst_46 : f32 to vector<16x1xf32>
      %146 = arith.addf %142, %145 : vector<16x1xf32>
      %147 = math.rsqrt %146 : vector<16x1xf32>
      %148 = vector.broadcast %147 : vector<16x1xf32> to vector<16x32xf32>
      %149 = arith.mulf %144, %148 : vector<16x32xf32>
      %150 = vector.broadcast %130 : vector<1x32xf32> to vector<16x32xf32>
      %151 = arith.mulf %149, %150 : vector<16x32xf32>
      %152 = vector.broadcast %131 : vector<1x32xf32> to vector<16x32xf32>
      %153 = arith.addf %151, %152 : vector<16x32xf32>
      %154 = vector.shape_cast %153 : vector<16x32xf32> to vector<4x4x32xf32>
      %155 = vector.extract_strided_slice %154 {offsets = [0, 0, 0], sizes = [4, 1, 32], strides = [1, 1, 1]} : vector<4x4x32xf32> to vector<4x1x32xf32>
      %156 = vector.shape_cast %155 : vector<4x1x32xf32> to vector<4x32xf32>
      %157 = vector.extract_strided_slice %154 {offsets = [0, 1, 0], sizes = [4, 1, 32], strides = [1, 1, 1]} : vector<4x4x32xf32> to vector<4x1x32xf32>
      %158 = vector.shape_cast %157 : vector<4x1x32xf32> to vector<4x32xf32>
      %159 = vector.extract_strided_slice %154 {offsets = [0, 2, 0], sizes = [4, 1, 32], strides = [1, 1, 1]} : vector<4x4x32xf32> to vector<4x1x32xf32>
      %160 = vector.shape_cast %159 : vector<4x1x32xf32> to vector<4x32xf32>
      %161 = vector.extract_strided_slice %154 {offsets = [0, 3, 0], sizes = [4, 1, 32], strides = [1, 1, 1]} : vector<4x4x32xf32> to vector<4x1x32xf32>
      %162 = vector.shape_cast %161 : vector<4x1x32xf32> to vector<4x32xf32>
      %163 = tpu.concatenate %156, %158, %160, %162 in 1 : vector<4x32xf32>, vector<4x32xf32>, vector<4x32xf32>, vector<4x32xf32> -> vector<4x128xf32>
      %c0_47 = arith.constant 0 : index
      %c0_48 = arith.constant 0 : index
      %164 = vector.load %arg8[%c0_47, %c0_48] : memref<4x128xf32, #tpu.memory_space<vmem>>, vector<4x128xf32>
      tpu.vector_store %arg8[%c0_47, %c0_48], %163 {strides = array<i32>} : memref<4x128xf32, #tpu.memory_space<vmem>>, vector<4x128xf32>,
    } else {
    }
    return
  }
  func.func @transform_0(%arg0: i32) -> (i32, i32) {
    %c0_i32 = arith.constant 0 : i32
    %c0_i32_0 = arith.constant 0 : i32
    %c0_i32_1 = arith.constant 0 : i32
    return %c0_i32, %c0_i32_0 : i32, i32
  }
  func.func @transform_1(%arg0: i32) -> (i32, i32, i32) {
    %c0_i32 = arith.constant 0 : i32
    %c0_i32_0 = arith.constant 0 : i32
    %c0_i32_1 = arith.constant 0 : i32
    return %arg0, %c0_i32, %c0_i32_0 : i32, i32, i32
  }
  func.func @transform_2(%arg0: i32) -> (i32, i32, i32) {
    %c0_i32 = arith.constant 0 : i32
    %c0_i32_0 = arith.constant 0 : i32
    %c0_i32_1 = arith.constant 0 : i32
    return %arg0, %c0_i32, %c0_i32_0 : i32, i32, i32
  }
  func.func @transform_3(%arg0: i32) -> (i32, i32, i32) {
    %c0_i32 = arith.constant 0 : i32
    %c0_i32_0 = arith.constant 0 : i32
    %c0_i32_1 = arith.constant 0 : i32
    return %arg0, %c0_i32, %c0_i32_0 : i32, i32, i32
  }
  func.func @transform_4(%arg0: i32) -> (i32, i32, i32) {
    %c0_i32 = arith.constant 0 : i32
    %c0_i32_0 = arith.constant 0 : i32
    %c0_i32_1 = arith.constant 0 : i32
    return %arg0, %c0_i32, %c0_i32_0 : i32, i32, i32
  }
  func.func @transform_5(%arg0: i32) -> (i32, i32, i32) {
    %c0_i32 = arith.constant 0 : i32
    %c0_i32_0 = arith.constant 0 : i32
    %c0_i32_1 = arith.constant 0 : i32
    return %arg0, %c0_i32, %c0_i32_0 : i32, i32, i32
  }
  func.func @transform_6(%arg0: i32) -> (i32, i32) {
    %c0_i32 = arith.constant 0 : i32
    %c0_i32_0 = arith.constant 0 : i32
    %c0_i32_1 = arith.constant 0 : i32
    return %c0_i32, %c0_i32_0 : i32, i32
  }
  func.func @transform_7(%arg0: i32) -> (i32, i32) {
    %c0_i32 = arith.constant 0 : i32
    %c0_i32_0 = arith.constant 0 : i32
    %c0_i32_1 = arith.constant 0 : i32
    return %c0_i32, %c0_i32_0 : i32, i32
  }
}

</mosaic_0001>

<llo_original>
// kernel: tpu_custom_call.1
$region0: #{tpu_custom_call.1}
  #allocation0 [shape = 'u32[]', space=smem, size = 0x4, offset = 0x4, fixed_abs, tag = 'smem constant byte address 0x4 - core index']
  #allocation1 [shape = 'u32[72,128]{1,0:T(1,128)}', space=vmem, size = 0x9000, scoped, tag = 'internal scratch']
  #allocation2 [shape = 'f32[16,32]{1,0:T(8,128)}', space=vmem, size = 0x2000, scoped, tag = 'scratch operand']
  %s0 = inlined_call_operand.hbm [shape: f32[16,32], index: 0, kind: input, shape index: {}]
  %s1 = inlined_call_operand.vmem [shape: bf16[2,32,96], index: 1, kind: input, shape index: {}]
  %s2 = inlined_call_operand.vmem [shape: bf16[2,32,32], index: 2, kind: input, shape index: {}]
  %s3 = inlined_call_operand.vmem [shape: bf16[2,32,64], index: 3, kind: input, shape index: {}]
  %s4 = inlined_call_operand.vmem [shape: bf16[2,64,32], index: 4, kind: input, shape index: {}]
  %s5 = inlined_call_operand.hbm [shape: f32[2,8,96], index: 5, kind: input, shape index: {}]
  %s6 = inlined_call_operand.vmem [shape: f32[2,32], index: 6, kind: input, shape index: {}]
  %s7 = inlined_call_operand.hbm [shape: f32[4,128], index: 7, kind: output, shape index: {}]
  %s8 = sld [smem:[#allocation0]]
  $region77: #{tpu_custom_call.1} parent=0
    _
  %s10 = ssub.s32 1, %s8
  %s11 = scalar_select 0, %s10, %s8
  $region1: #{tpu_custom_call.1} parent=0
    #allocation3 [shape = 'u8[8192]{0}', space=vmem, size = 0x2000, scoped, tag = 'input window, operand 0, single buffered']
    #allocation4 [shape = 's32[2]{0}', space=sflag, size = 0x8, scoped, tag = 'scoped memory for tpu_custom_call.1']
    #allocation5 [shape = 's32[2]{0}', space=sflag, size = 0x8, scoped, tag = 'scoped memory for tpu_custom_call.1']
    #allocation6 [shape = 'u8[8192]{0}', space=vmem, size = 0x2000, scoped, tag = 'input window, operand 5']
    #allocation7 [shape = 's32[2]{0}', space=sflag, size = 0x8, scoped, tag = 'scoped memory for tpu_custom_call.1']
    #allocation8 [shape = 'u8[2048]{0}', space=vmem, size = 0x800, scoped, tag = 'output window, operand 0, single buffered']
    %12 = vsyncpa [#allocation4], 0
    %13 = vsyncpa [#allocation7], 0
    %s14 = scalar_lea.sflag [#allocation7], 1
    %15 = vsyncpa %s14, 0
    %16 = vsyncpa [#allocation5], 0
    loop: start=0, step=1, limit=4
    $region2: #{tpu_custom_call.1} parent=1 // loop_pre_header
      _
    $region3: #{tpu_custom_call.1} parent=1 // loop_header
      %s18 = sphi 0, %s22
      %p19 = scmp.ge.s32.totalorder %s18, 4
      %s26 = sphi 0, %s26
      %s28 = sphi 0, %s26
      %s29 = sphi 0, %s28
      %s43 = sphi 0, %s29
      %s49 = sphi 0, %s51
      %s52 = sphi 0, %s49
      %s53 = sphi 0, %s52
      %s69 = sphi 0, %s53
      %s75 = sphi 0, %s77
      %s78 = sphi 0, %s75
      %s79 = sphi 0, %s78
      %s95 = sphi 0, %s79
      %s101 = sphi 0, %s103
      %s104 = sphi 0, %s101
      %s105 = sphi 0, %s104
      %s121 = sphi 0, %s105
      %s127 = sphi 0, %s129
      %s130 = sphi 0, %s127
      %s131 = sphi 0, %s130
      %s147 = sphi 0, %s131
      %s153 = sphi 0, %s155
      %s156 = sphi 0, %s153
      %s157 = sphi 0, %s156
      %s173 = sphi 0, %s157
      %s177 = sphi 0, %s177
      %s179 = sphi 0, %s177
      %s180 = sphi 0, %s179
      %s194 = sphi 0, %s180
      %s198 = sphi 0, %s198
      %s200 = sphi 0, %s198
      %s201 = sphi 0, %s200
      %s215 = sphi 0, %s201
    $region4: #{tpu_custom_call.1} parent=1 // loop_header_branch
      %21 = sbr.rel (%p19) target = $region8
    $region5: #{tpu_custom_call.1} parent=1 // loop_body
      %s23 = ssub.s32 %s18, 1
      %s24 = ssub.s32 %s18, 2
      %s25 = sadd.s32 %s18, 1
      %s27 = sadd.s32 %s26, 1
      %p30 = scmp.eq.s32.totalorder %s18, 1
      %p31 = scmp.ne.s32.totalorder %s26, %s28
      %p32 = scmp.eq.s32.totalorder %s18, 0
      %p33 = por %p31, %p32
      %p34 = scmp.ne.s32.totalorder %s26, %s28
      %p35 = scmp.eq.s32.totalorder %s23, 1
      %p36 = por %p34, %p35
      %p37 = scmp.ne.s32.totalorder %s28, %s29
      %p38 = scmp.eq.s32.totalorder %s23, 0
      %p39 = por %p37, %p38
      %p40 = scmp.ne.s32.totalorder %s28, %s29
      %p41 = scmp.eq.s32.totalorder %s24, 1
      %p42 = por %p40, %p41
      %p44 = scmp.ne.s32.totalorder %s29, %s43
      %p45 = scmp.eq.s32.totalorder %s24, 0
      %p46 = por %p44, %p45
      %s47 = ssub.s32 %s18, %s25
      %p48 = scmp.eq.s32.totalorder %s47, 0
      %s50 = sadd.s32 %s49, 1
      %s51 = scalar_select %p48, %s49, %s50
      %p54 = pneg %p48
      %p55 = scmp.eq.s32.totalorder %s18, 1
      %p56 = por %p54, %p55
      %p57 = scmp.ne.s32.totalorder %s49, %s52
      %p58 = scmp.eq.s32.totalorder %s18, 0
      %p59 = por %p57, %p58
      %p60 = scmp.ne.s32.totalorder %s49, %s52
      %p61 = scmp.eq.s32.totalorder %s23, 1
      %p62 = por %p60, %p61
      %p63 = scmp.ne.s32.totalorder %s52, %s53
      %p64 = scmp.eq.s32.totalorder %s23, 0
      %p65 = por %p63, %p64
      %p66 = scmp.ne.s32.totalorder %s52, %s53
      %p67 = scmp.eq.s32.totalorder %s24, 1
      %p68 = por %p66, %p67
      %p70 = scmp.ne.s32.totalorder %s53, %s69
      %p71 = scmp.eq.s32.totalorder %s24, 0
      %p72 = por %p70, %p71
      %s73 = ssub.s32 %s18, %s25
      %p74 = scmp.eq.s32.totalorder %s73, 0
      %s76 = sadd.s32 %s75, 1
      %s77 = scalar_select %p74, %s75, %s76
      %p80 = pneg %p74
      %p81 = scmp.eq.s32.totalorder %s18, 1
      %p82 = por %p80, %p81
      %p83 = scmp.ne.s32.totalorder %s75, %s78
      %p84 = scmp.eq.s32.totalorder %s18, 0
      %p85 = por %p83, %p84
      %p86 = scmp.ne.s32.totalorder %s75, %s78
      %p87 = scmp.eq.s32.totalorder %s23, 1
      %p88 = por %p86, %p87
      %p89 = scmp.ne.s32.totalorder %s78, %s79
      %p90 = scmp.eq.s32.totalorder %s23, 0
      %p91 = por %p89, %p90
      %p92 = scmp.ne.s32.totalorder %s78, %s79
      %p93 = scmp.eq.s32.totalorder %s24, 1
      %p94 = por %p92, %p93
      %p96 = scmp.ne.s32.totalorder %s79, %s95
      %p97 = scmp.eq.s32.totalorder %s24, 0
      %p98 = por %p96, %p97
      %s99 = ssub.s32 %s18, %s25
      %p100 = scmp.eq.s32.totalorder %s99, 0
      %s102 = sadd.s32 %s101, 1
      %s103 = scalar_select %p100, %s101, %s102
      %p106 = pneg %p100
      %p107 = scmp.eq.s32.totalorder %s18, 1
      %p108 = por %p106, %p107
      %p109 = scmp.ne.s32.totalorder %s101, %s104
      %p110 = scmp.eq.s32.totalorder %s18, 0
      %p111 = por %p109, %p110
      %p112 = scmp.ne.s32.totalorder %s101, %s104
      %p113 = scmp.eq.s32.totalorder %s23, 1
      %p114 = por %p112, %p113
      %p115 = scmp.ne.s32.totalorder %s104, %s105
      %p116 = scmp.eq.s32.totalorder %s23, 0
      %p117 = por %p115, %p116
      %p118 = scmp.ne.s32.totalorder %s104, %s105
      %p119 = scmp.eq.s32.totalorder %s24, 1
      %p120 = por %p118, %p119
      %p122 = scmp.ne.s32.totalorder %s105, %s121
      %p123 = scmp.eq.s32.totalorder %s24, 0
      %p124 = por %p122, %p123
      %s125 = ssub.s32 %s18, %s25
      %p126 = scmp.eq.s32.totalorder %s125, 0
      %s128 = sadd.s32 %s127, 1
      %s129 = scalar_select %p126, %s127, %s128
      %p132 = pneg %p126
      %p133 = scmp.eq.s32.totalorder %s18, 1
      %p134 = por %p132, %p133
      %p135 = scmp.ne.s32.totalorder %s127, %s130
      %p136 = scmp.eq.s32.totalorder %s18, 0
      %p137 = por %p135, %p136
      %p138 = scmp.ne.s32.totalorder %s127, %s130
      %p139 = scmp.eq.s32.totalorder %s23, 1
      %p140 = por %p138, %p139
      %p141 = scmp.ne.s32.totalorder %s130, %s131
      %p142 = scmp.eq.s32.totalorder %s23, 0
      %p143 = por %p141, %p142
      %p144 = scmp.ne.s32.totalorder %s130, %s131
      %p145 = scmp.eq.s32.totalorder %s24, 1
      %p146 = por %p144, %p145
      %p148 = scmp.ne.s32.totalorder %s131, %s147
      %p149 = scmp.eq.s32.totalorder %s24, 0
      %p150 = por %p148, %p149
      %s151 = ssub.s32 %s18, %s25
      %p152 = scmp.eq.s32.totalorder %s151, 0
      %s154 = sadd.s32 %s153, 1
      %s155 = scalar_select %p152, %s153, %s154
      %p158 = pneg %p152
      %p159 = scmp.eq.s32.totalorder %s18, 1
      %p160 = por %p158, %p159
      %p161 = scmp.ne.s32.totalorder %s153, %s156
      %p162 = scmp.eq.s32.totalorder %s18, 0
      %p163 = por %p161, %p162
      %p164 = scmp.ne.s32.totalorder %s153, %s156
      %p165 = scmp.eq.s32.totalorder %s23, 1
      %p166 = por %p164, %p165
      %p167 = scmp.ne.s32.totalorder %s156, %s157
      %p168 = scmp.eq.s32.totalorder %s23, 0
      %p169 = por %p167, %p168
      %p170 = scmp.ne.s32.totalorder %s156, %s157
      %p171 = scmp.eq.s32.totalorder %s24, 1
      %p172 = por %p170, %p171
      %p174 = scmp.ne.s32.totalorder %s157, %s173
      %p175 = scmp.eq.s32.totalorder %s24, 0
      %p176 = por %p174, %p175
      %s178 = sadd.s32 %s177, 1
      %p181 = scmp.eq.s32.totalorder %s18, 1
      %p182 = scmp.ne.s32.totalorder %s177, %s179
      %p183 = scmp.eq.s32.totalorder %s18, 0
      %p184 = por %p182, %p183
      %p185 = scmp.ne.s32.totalorder %s177, %s179
      %p186 = scmp.eq.s32.totalorder %s23, 1
      %p187 = por %p185, %p186
      %p188 = scmp.ne.s32.totalorder %s179, %s180
      %p189 = scmp.eq.s32.totalorder %s23, 0
      %p190 = por %p188, %p189
      %p191 = scmp.ne.s32.totalorder %s179, %s180
      %p192 = scmp.eq.s32.totalorder %s24, 1
      %p193 = por %p191, %p192
      %p195 = scmp.ne.s32.totalorder %s180, %s194
      %p196 = scmp.eq.s32.totalorder %s24, 0
      %p197 = por %p195, %p196
      %s199 = sadd.s32 %s198, 1
      %p202 = scmp.eq.s32.totalorder %s18, 1
      %p203 = scmp.ne.s32.totalorder %s198, %s200
      %p204 = scmp.eq.s32.totalorder %s18, 0
      %p205 = por %p203, %p204
      %p206 = scmp.ne.s32.totalorder %s198, %s200
      %p207 = scmp.eq.s32.totalorder %s23, 1
      %p208 = por %p206, %p207
      %p209 = scmp.ne.s32.totalorder %s200, %s201
      %p210 = scmp.eq.s32.totalorder %s23, 0
      %p211 = por %p209, %p210
      %p212 = scmp.ne.s32.totalorder %s200, %s201
      %p213 = scmp.eq.s32.totalorder %s24, 1
      %p214 = por %p212, %p213
      %p216 = scmp.ne.s32.totalorder %s201, %s215
      %p217 = scmp.eq.s32.totalorder %s24, 0
      %p218 = por %p216, %p217
      %p219 = scmp.le.s32.totalorder 1, %s18
      %p220 = scmp.lt.s32.totalorder %s18, 3
      %p221 = pnand %p219, %p220
      %p222 = pneg %p221
      // Predicated region
      $region9: #{tpu_custom_call.1} parent=5 // pred_check
        _
      $region10: #{tpu_custom_call.1} parent=5 // pred_check_branch
        %224 = sbr.rel (%p221) target = $region12
      $region11: #{tpu_custom_call.1} parent=5 // pred_region
        %s225 = ssub.s32 %s18, 1
        // Predicated region
        $region13: #{tpu_custom_call.1} parent=11 // pred_check
          %p226 = pneg %p39
        $region14: #{tpu_custom_call.1} parent=11 // pred_check_branch
          %228 = sbr.rel (%p226) target = $region16
        $region15: #{tpu_custom_call.1} parent=11 // pred_region
          %230 = vsyncadd [#allocation4], 0
          %s231 = sshll.u32 %s0, 4
          %s232 = int_to_ptr.hbm [resolvable:$true] %s231
          %s233 = sshll.u32 [#allocation3], 4
          %s234 = int_to_ptr.vmem [resolvable:$true] %s233
          %239 = dma.hbm_to_vmem [thread:$0]  %s232, 256, %s234, [#allocation4], 128, 128, 8
        $region16: #{tpu_custom_call.1} parent=11 // pred_fallthru
          _
        // Predicated region
        $region17: #{tpu_custom_call.1} parent=11 // pred_check
          %p240 = pneg %p190
        $region18: #{tpu_custom_call.1} parent=11 // pred_check_branch
          %242 = sbr.rel (%p240) target = $region20
        $region19: #{tpu_custom_call.1} parent=11 // pred_region
          _
        $region20: #{tpu_custom_call.1} parent=11 // pred_fallthru
          _
      $region12: #{tpu_custom_call.1} parent=5 // pred_fallthru
        _
      %p243 = scmp.lt.s32.totalorder %s18, 2
      // Predicated region
      $region21: #{tpu_custom_call.1} parent=5 // pred_check
        %p244 = pneg %p243
      $region22: #{tpu_custom_call.1} parent=5 // pred_check_branch
        %246 = sbr.rel (%p244) target = $region24
      $region23: #{tpu_custom_call.1} parent=5 // pred_region
        // Predicated region
        $region25: #{tpu_custom_call.1} parent=23 // pred_check
          %p247 = pneg %p59
        $region26: #{tpu_custom_call.1} parent=23 // pred_check_branch
          %249 = sbr.rel (%p247) target = $region28
        $region27: #{tpu_custom_call.1} parent=23 // pred_region
          %p250 = scmp.lt.s32.totalorder %s18, 1
          %s251 = scalar_select %p250, %s18, 1
          %s252 = smul.addr %s251, 4
          %s253 = smul.addr %s252, 4
          %s254 = scalar_lea.vmem %s1, %s253
        $region28: #{tpu_custom_call.1} parent=23 // pred_fallthru
          _
        // Predicated region
        $region29: #{tpu_custom_call.1} parent=23 // pred_check
          %p255 = pneg %p85
        $region30: #{tpu_custom_call.1} parent=23 // pred_check_branch
          %257 = sbr.rel (%p255) target = $region32
        $region31: #{tpu_custom_call.1} parent=23 // pred_region
          %p258 = scmp.lt.s32.totalorder %s18, 1
          %s259 = scalar_select %p258, %s18, 1
          %s260 = smul.addr %s259, 4
          %s261 = smul.addr %s260, 4
          %s262 = scalar_lea.vmem %s2, %s261
        $region32: #{tpu_custom_call.1} parent=23 // pred_fallthru
          _
        // Predicated region
        $region33: #{tpu_custom_call.1} parent=23 // pred_check
          %p263 = pneg %p111
        $region34: #{tpu_custom_call.1} parent=23 // pred_check_branch
          %265 = sbr.rel (%p263) target = $region36
        $region35: #{tpu_custom_call.1} parent=23 // pred_region
          %p266 = scmp.lt.s32.totalorder %s18, 1
          %s267 = scalar_select %p266, %s18, 1
          %s268 = smul.addr %s267, 4
          %s269 = smul.addr %s268, 4
          %s270 = scalar_lea.vmem %s3, %s269
        $region36: #{tpu_custom_call.1} parent=23 // pred_fallthru
          _
        // Predicated region
        $region37: #{tpu_custom_call.1} parent=23 // pred_check
          %p271 = pneg %p137
        $region38: #{tpu_custom_call.1} parent=23 // pred_check_branch
          %273 = sbr.rel (%p271) target = $region40
        $region39: #{tpu_custom_call.1} parent=23 // pred_region
          %p274 = scmp.lt.s32.totalorder %s18, 1
          %s275 = scalar_select %p274, %s18, 1
          %s276 = smul.addr %s275, 8
          %s277 = smul.addr %s276, 4
          %s278 = scalar_lea.vmem %s4, %s277
        $region40: #{tpu_custom_call.1} parent=23 // pred_fallthru
          _
        // Predicated region
        $region41: #{tpu_custom_call.1} parent=23 // pred_check
          %p279 = pneg %p163
        $region42: #{tpu_custom_call.1} parent=23 // pred_check_branch
          %281 = sbr.rel (%p279) target = $region44
        $region43: #{tpu_custom_call.1} parent=23 // pred_region
          %s282 = sand.u32 %s153, 1
          %s283 = scalar_lea.sflag [#allocation7], %s282
          %s284 = sand.u32 %s153, 1
          %s285 = smul.addr %s284, 8
          %s286 = scalar_lea.vmem [#allocation6], %s285
          %288 = vsyncadd %s283, 0
          %s289 = smul.addr %s18, 8
          %s290 = scalar_lea.hbm %s5, %s289
          %s292 = sshll.u32 %s290, 4
          %s293 = int_to_ptr.hbm [resolvable:$true] %s292
          %s294 = sshll.u32 %s286, 4
          %s295 = int_to_ptr.vmem [resolvable:$true] %s294
          %297 = dma.hbm_to_vmem [thread:$0]  %s293, 128, %s295, %s283
        $region44: #{tpu_custom_call.1} parent=23 // pred_fallthru
          _
      $region24: #{tpu_custom_call.1} parent=5 // pred_fallthru
        _
      %p298 = scmp.le.s32.totalorder 1, %s18
      %p299 = scmp.lt.s32.totalorder %s18, 3
      %p300 = pnand %p298, %p299
      %p301 = pneg %p300
      // Predicated region
      $region45: #{tpu_custom_call.1} parent=5 // pred_check
        _
      $region46: #{tpu_custom_call.1} parent=5 // pred_check_branch
        %303 = sbr.rel (%p300) target = $region48
      $region47: #{tpu_custom_call.1} parent=5 // pred_region
        %s304 = ssub.s32 %s18, 1
        // Predicated region
        $region49: #{tpu_custom_call.1} parent=47 // pred_check
          %p305 = pneg %p39
        $region50: #{tpu_custom_call.1} parent=47 // pred_check_branch
          %307 = sbr.rel (%p305) target = $region52
        $region51: #{tpu_custom_call.1} parent=47 // pred_region
          %309 = dma.done [#allocation4], 256
        $region52: #{tpu_custom_call.1} parent=47 // pred_fallthru
          _
        %s310 = sand.u32 %s156, 1
        %s311 = scalar_lea.sflag [#allocation7], %s310
        %s312 = sand.u32 %s156, 1
        %s313 = smul.addr %s312, 8
        %s314 = scalar_lea.vmem [#allocation6], %s313
        // Predicated region
        $region53: #{tpu_custom_call.1} parent=47 // pred_check
          %p315 = pneg %p169
        $region54: #{tpu_custom_call.1} parent=47 // pred_check_branch
          %317 = sbr.rel (%p315) target = $region56
        $region55: #{tpu_custom_call.1} parent=47 // pred_region
          %319 = dma.done %s311, 128
        $region56: #{tpu_custom_call.1} parent=47 // pred_fallthru
          _
        %p320 = pneg %p39
        %p321 = pneg %p36
        %p322 = scmp.lt.s32.totalorder %s23, 1
        %s323 = scalar_select %p322, %s23, 1
        %s324 = smul.addr %s323, 4
        %s325 = smul.addr %s324, 4
        %s326 = scalar_lea.vmem %s1, %s325
        %p327 = pneg %p65
        %p328 = pneg %p62
        %p329 = scmp.lt.s32.totalorder %s23, 1
        %s330 = scalar_select %p329, %s23, 1
        %s331 = smul.addr %s330, 4
        %s332 = smul.addr %s331, 4
        %s333 = scalar_lea.vmem %s2, %s332
        %p334 = pneg %p91
        %p335 = pneg %p88
        %p336 = scmp.lt.s32.totalorder %s23, 1
        %s337 = scalar_select %p336, %s23, 1
        %s338 = smul.addr %s337, 4
        %s339 = smul.addr %s338, 4
        %s340 = scalar_lea.vmem %s3, %s339
        %p341 = pneg %p117
        %p342 = pneg %p114
        %p343 = scmp.lt.s32.totalorder %s23, 1
        %s344 = scalar_select %p343, %s23, 1
        %s345 = smul.addr %s344, 8
        %s346 = smul.addr %s345, 4
        %s347 = scalar_lea.vmem %s4, %s346
        %p348 = pneg %p143
        %p349 = pneg %p140
        %s350 = sand.u32 %s156, 1
        %s351 = scalar_lea.sflag [#allocation7], %s350
        %s352 = sand.u32 %s156, 1
        %s353 = smul.addr %s352, 8
        %s354 = scalar_lea.vmem [#allocation6], %s353
        %p355 = pneg %p169
        %p356 = pneg %p166
        %p357 = pneg %p190
        %p358 = pneg %p187
        %p359 = pneg %p211
        %p360 = pneg %p208
        %p361 = scmp.lt.s32.totalorder %s23, 1
        %s362 = scalar_select %p361, %s23, 1
        %s363 = smul.addr %s362, 4
        %s364 = smul.addr %s363, 4
        %s365 = scalar_lea.vmem %s1, %s364
        %p366 = scmp.lt.s32.totalorder %s23, 1
        %s367 = scalar_select %p366, %s23, 1
        %s368 = smul.addr %s367, 4
        %s369 = smul.addr %s368, 4
        %s370 = scalar_lea.vmem %s2, %s369
        %p371 = scmp.lt.s32.totalorder %s23, 1
        %s372 = scalar_select %p371, %s23, 1
        %s373 = smul.addr %s372, 4
        %s374 = smul.addr %s373, 4
        %s375 = scalar_lea.vmem %s3, %s374
        %p376 = scmp.lt.s32.totalorder %s23, 1
        %s377 = scalar_select %p376, %s23, 1
        %s378 = smul.addr %s377, 8
        %s379 = smul.addr %s378, 4
        %s380 = scalar_lea.vmem %s4, %s379
        %p382 = scmp.eq.s32.totalorder %s23, 0
        // Predicated region
        $region57: #{tpu_custom_call.1} parent=47 // pred_check
          %p383 = pneg %p382
        $region58: #{tpu_custom_call.1} parent=47 // pred_check_branch
          %385 = sbr.rel (%p383) target = $region60
        $region59: #{tpu_custom_call.1} parent=47 // pred_region
          %v386 = vld [vmem:[#allocation3] sm:$0xff]
          %v387 = vld [vmem:[#allocation3 + $0x8] sm:$0xff]
          %vm388 = vcmask 261120
          %389 = vst.msk [vmem:[#allocation2] sm:$0xff] %vm388, %v386
          %390 = vst.msk [vmem:[#allocation2 + $0x8] sm:$0xff] %vm388, %v387
        $region60: #{tpu_custom_call.1} parent=47 // pred_fallthru
          _
        %v391 = vld [vmem:[#allocation2] sm:$0xff]
        %v392 = vld [vmem:[#allocation2 + $0x8] sm:$0xff]
        %v393 = vld [vmem:[%s365] sm:$0xf]
        %v394 = vld [vmem:[%s365 + $0x4] sm:$0xf]
        %v395 = vld [vmem:[%s365 + $0x8] sm:$0xf]
        %v396 = vld [vmem:[%s365 + $0xc] sm:$0xf]
        %v397 = vld [vmem:[%s370] sm:$0xf]
        %v398 = vld [vmem:[%s370 + $0x4] sm:$0xf]
        %v399 = vld [vmem:[%s370 + $0x8] sm:$0xf]
        %v400 = vld [vmem:[%s370 + $0xc] sm:$0xf]
        %v401 = vld [vmem:[%s375] sm:$0xf]
        %v402 = vld [vmem:[%s375 + $0x4] sm:$0xf]
        %v403 = vld [vmem:[%s375 + $0x8] sm:$0xf]
        %v404 = vld [vmem:[%s375 + $0xc] sm:$0xf]
        %v405 = vld [vmem:[%s380] sm:$0xf]
        %v406 = vld [vmem:[%s380 + $0x4] sm:$0xf]
        %v407 = vld [vmem:[%s380 + $0x8] sm:$0xf]
        %v408 = vld [vmem:[%s380 + $0xc] sm:$0xf]
        %v409 = vld [vmem:[%s380 + $0x10] sm:$0xf]
        %v410 = vld [vmem:[%s380 + $0x14] sm:$0xf]
        %v411 = vld [vmem:[%s380 + $0x18] sm:$0xf]
        %v412 = vld [vmem:[%s380 + $0x1c] sm:$0xf]
        %v413 = vld [vmem:[%s314] sm:$0xff]
        %v414 = vpack.c.bf16 %v392, %v391
        %v415 = vperm.slane %v413, 0
        %v420 = vunpack.c.l.b16 %v393
        %v421 = vunpack.c.l.b16 %v394
        %v422 = vunpack.c.l.b16 %v395
        %v423 = vunpack.c.l.b16 %v396
        %v424 = vpack.c.b16 %v421, %v420
        %v425 = vpack.c.b16 %v423, %v422
        %vm428 = vcmask 261120
        %v430 = vsel %vm428, %v414, 0
        %432 = vmatpush.bf16.msra.mxu0 0
        %433 = vmatpush.bf16.msra.mxu0 0
        %434 = vmatpush.bf16.msra.mxu0 0
        %435 = vmatpush.bf16.msra.mxu0 0
        %436 = vmatpush.bf16.msra.mxu0 0
        %437 = vmatpush.bf16.msra.mxu0 0
        %438 = vmatpush.bf16.msra.mxu0 %v425
        %439 = vmatpush.bf16.msra.mxu0 %v424
        %440 = vmatmul.bf16.gmra.mxu0 %v430
        %v441 = vpop.f32.mrf.mxu0
        %v442 = vadd.f32 %v415, %v441
        %v443 = vpop.f32.mrf.mxu0
        %v444 = vadd.f32 %v415, %v443
        %445 = vdwg.mxu0
        %448 = vrot.lane.b32.xlu0 %v442, 120
        %v449 = vpop.permute.xlu0 %448
        %450 = vrot.lane.b32.xlu0 %v444, 120
        %v451 = vpop.permute.xlu0 %450
        %454 = vrot.lane.b32.xlu0 %v442, 112
        %v455 = vpop.permute.xlu0 %454
        %456 = vrot.lane.b32.xlu0 %v444, 112
        %v457 = vpop.permute.xlu0 %456
        %460 = vrot.lane.b32.xlu0 %v442, 104
        %v461 = vpop.permute.xlu0 %460
        %462 = vrot.lane.b32.xlu0 %v444, 104
        %v463 = vpop.permute.xlu0 %462
        %v466 = vpack.c.bf16 %v442, %v442
        %v467 = vpack.c.bf16 %v444, %v444
        %v468 = vpack.c.bf16 %v449, %v449
        %v469 = vpack.c.bf16 %v451, %v451
        %v470 = vpack.c.bf16 %v455, %v455
        %v471 = vpack.c.bf16 %v457, %v457
        %v472 = vpack.c.bf16 %v461, %v461
        %v473 = vpack.c.bf16 %v463, %v463
        %v475 = vunpack.c.l.b16 %v466
        %v476 = vpack.c.b16 %v475, %v475
        %477 = vrot.lane.b32.xlu0 %v476, 96
        %v478 = vpop.permute.xlu0 %477
        %vm479 = vcmask 64512
        %v481 = vsel %vm479, %v466, 0
        %v484 = vsel %vm479, %v478, 0
        %486 = vmatpush.bf16.xpose.msra.mxu0 0
        %487 = vmatpush.bf16.xpose.msra.mxu0 0
        %488 = vmatpush.bf16.xpose.msra.mxu0 0
        %489 = vmatpush.bf16.xpose.msra.mxu0 0
        %490 = vmatpush.bf16.xpose.msra.mxu0 0
        %491 = vmatpush.bf16.xpose.msra.mxu0 0
        %492 = vmatpush.bf16.xpose.msra.mxu0 0
        %493 = vmatpush.bf16.xpose.msra.mxu0 %v484
        %494 = vmatmul.bf16.gmra.mxu0 %v481
        %v495 = vpop.f32.mrf.mxu0
        %v496 = vadd.f32 0.0, %v495
        %v497 = vpop.f32.mrf.mxu0
        %498 = vdwg.mxu0
        %v500 = vunpack.c.l.b16 %v467
        %v501 = vpack.c.b16 %v500, %v500
        %502 = vrot.lane.b32.xlu0 %v501, 96
        %v503 = vpop.permute.xlu0 %502
        %v505 = vsel %vm479, %v467, 0
        %v508 = vsel %vm479, %v503, 0
        %510 = vmatpush.bf16.xpose.msra.mxu0 0
        %511 = vmatpush.bf16.xpose.msra.mxu0 0
        %512 = vmatpush.bf16.xpose.msra.mxu0 0
        %513 = vmatpush.bf16.xpose.msra.mxu0 0
        %514 = vmatpush.bf16.xpose.msra.mxu0 0
        %515 = vmatpush.bf16.xpose.msra.mxu0 0
        %516 = vmatpush.bf16.xpose.msra.mxu0 0
        %517 = vmatpush.bf16.xpose.msra.mxu0 %v508
        %518 = vmatmul.bf16.gmra.mxu0 %v505
        %v519 = vpop.f32.mrf.mxu0
        %v520 = vadd.f32 0.0, %v519
        %v521 = vpop.f32.mrf.mxu0
        %522 = vdwg.mxu0
        %v524 = vunpack.c.l.b16 %v468
        %v525 = vpack.c.b16 %v524, %v524
        %526 = vrot.lane.b32.xlu0 %v525, 96
        %v527 = vpop.permute.xlu0 %526
        %v529 = vsel %vm479, %v468, 0
        %v532 = vsel %vm479, %v527, 0
        %534 = vmatpush.bf16.xpose.msra.mxu0 0
        %535 = vmatpush.bf16.xpose.msra.mxu0 0
        %536 = vmatpush.bf16.xpose.msra.mxu0 0
        %537 = vmatpush.bf16.xpose.msra.mxu0 0
        %538 = vmatpush.bf16.xpose.msra.mxu0 0
        %539 = vmatpush.bf16.xpose.msra.mxu0 0
        %540 = vmatpush.bf16.xpose.msra.mxu0 0
        %541 = vmatpush.bf16.xpose.msra.mxu0 %v532
        %542 = vmatmul.bf16.gmra.mxu0 %v529
        %v543 = vpop.f32.mrf.mxu0
        %v544 = vadd.f32 0.0, %v543
        %v545 = vpop.f32.mrf.mxu0
        %546 = vdwg.mxu0
        %v548 = vunpack.c.l.b16 %v469
        %v549 = vpack.c.b16 %v548, %v548
        %550 = vrot.lane.b32.xlu0 %v549, 96
        %v551 = vpop.permute.xlu0 %550
        %v553 = vsel %vm479, %v469, 0
        %v556 = vsel %vm479, %v551, 0
        %558 = vmatpush.bf16.xpose.msra.mxu0 0
        %559 = vmatpush.bf16.xpose.msra.mxu0 0
        %560 = vmatpush.bf16.xpose.msra.mxu0 0
        %561 = vmatpush.bf16.xpose.msra.mxu0 0
        %562 = vmatpush.bf16.xpose.msra.mxu0 0
        %563 = vmatpush.bf16.xpose.msra.mxu0 0
        %564 = vmatpush.bf16.xpose.msra.mxu0 0
        %565 = vmatpush.bf16.xpose.msra.mxu0 %v556
        %566 = vmatmul.bf16.gmra.mxu0 %v553
        %v567 = vpop.f32.mrf.mxu0
        %v568 = vadd.f32 0.0, %v567
        %v569 = vpop.f32.mrf.mxu0
        %570 = vdwg.mxu0
        %v572 = vunpack.c.l.b16 %v470
        %v573 = vpack.c.b16 %v572, %v572
        %574 = vrot.lane.b32.xlu0 %v573, 96
        %v575 = vpop.permute.xlu0 %574
        %v577 = vsel %vm479, %v470, 0
        %v580 = vsel %vm479, %v575, 0
        %582 = vmatpush.bf16.xpose.msra.mxu0 0
        %583 = vmatpush.bf16.xpose.msra.mxu0 0
        %584 = vmatpush.bf16.xpose.msra.mxu0 0
        %585 = vmatpush.bf16.xpose.msra.mxu0 0
        %586 = vmatpush.bf16.xpose.msra.mxu0 0
        %587 = vmatpush.bf16.xpose.msra.mxu0 0
        %588 = vmatpush.bf16.xpose.msra.mxu0 0
        %589 = vmatpush.bf16.xpose.msra.mxu0 %v580
        %590 = vmatmul.bf16.gmra.mxu0 %v577
        %v591 = vpop.f32.mrf.mxu0
        %v592 = vadd.f32 0.0, %v591
        %v593 = vpop.f32.mrf.mxu0
        %594 = vdwg.mxu0
        %v596 = vunpack.c.l.b16 %v471
        %v597 = vpack.c.b16 %v596, %v596
        %598 = vrot.lane.b32.xlu0 %v597, 96
        %v599 = vpop.permute.xlu0 %598
        %v601 = vsel %vm479, %v471, 0
        %v604 = vsel %vm479, %v599, 0
        %606 = vmatpush.bf16.xpose.msra.mxu0 0
        %607 = vmatpush.bf16.xpose.msra.mxu0 0
        %608 = vmatpush.bf16.xpose.msra.mxu0 0
        %609 = vmatpush.bf16.xpose.msra.mxu0 0
        %610 = vmatpush.bf16.xpose.msra.mxu0 0
        %611 = vmatpush.bf16.xpose.msra.mxu0 0
        %612 = vmatpush.bf16.xpose.msra.mxu0 0
        %613 = vmatpush.bf16.xpose.msra.mxu0 %v604
        %614 = vmatmul.bf16.gmra.mxu0 %v601
        %v615 = vpop.f32.mrf.mxu0
        %v616 = vadd.f32 0.0, %v615
        %v617 = vpop.f32.mrf.mxu0
        %618 = vdwg.mxu0
        %v620 = vunpack.c.l.b16 %v472
        %v621 = vpack.c.b16 %v620, %v620
        %622 = vrot.lane.b32.xlu0 %v621, 96
        %v623 = vpop.permute.xlu0 %622
        %v625 = vsel %vm479, %v472, 0
        %v628 = vsel %vm479, %v623, 0
        %630 = vmatpush.bf16.xpose.msra.mxu0 0
        %631 = vmatpush.bf16.xpose.msra.mxu0 0
        %632 = vmatpush.bf16.xpose.msra.mxu0 0
        %633 = vmatpush.bf16.xpose.msra.mxu0 0
        %634 = vmatpush.bf16.xpose.msra.mxu0 0
        %635 = vmatpush.bf16.xpose.msra.mxu0 0
        %636 = vmatpush.bf16.xpose.msra.mxu0 0
        %637 = vmatpush.bf16.xpose.msra.mxu0 %v628
        %638 = vmatmul.bf16.gmra.mxu0 %v625
        %v639 = vpop.f32.mrf.mxu0
        %v640 = vadd.f32 0.0, %v639
        %v641 = vpop.f32.mrf.mxu0
        %642 = vdwg.mxu0
        %v644 = vunpack.c.l.b16 %v473
        %v645 = vpack.c.b16 %v644, %v644
        %646 = vrot.lane.b32.xlu0 %v645, 96
        %v647 = vpop.permute.xlu0 %646
        %v649 = vsel %vm479, %v473, 0
        %v652 = vsel %vm479, %v647, 0
        %654 = vmatpush.bf16.xpose.msra.mxu0 0
        %655 = vmatpush.bf16.xpose.msra.mxu0 0
        %656 = vmatpush.bf16.xpose.msra.mxu0 0
        %657 = vmatpush.bf16.xpose.msra.mxu0 0
        %658 = vmatpush.bf16.xpose.msra.mxu0 0
        %659 = vmatpush.bf16.xpose.msra.mxu0 0
        %660 = vmatpush.bf16.xpose.msra.mxu0 0
        %661 = vmatpush.bf16.xpose.msra.mxu0 %v652
        %662 = vmatmul.bf16.gmra.mxu0 %v649
        %v663 = vpop.f32.mrf.mxu0
        %v664 = vadd.f32 0.0, %v663
        %v665 = vpop.f32.mrf.mxu0
        %666 = vdwg.mxu0
        %v667 = vmul.f32 %v496, 0.35355338
        %v668 = vmul.f32 %v520, 0.35355338
        %v669 = vmul.f32 %v544, 0.35355338
        %v670 = vmul.f32 %v568, 0.35355338
        %v671 = vmul.f32 %v592, 0.35355338
        %v672 = vmul.f32 %v616, 0.35355338
        %v673 = vmul.f32 %v640, 0.35355338
        %v674 = vmul.f32 %v664, 0.35355338
        %v675 = vsel %vm479, %v667, -inf
        %676 = vmax.xlane.f32.xlu0 %v675
        %v677 = vpop.xlane.xlu0 %676
        %v678 = vsel %vm479, %v668, -inf
        %679 = vmax.xlane.f32.xlu0 %v678
        %v680 = vpop.xlane.xlu0 %679
        %v681 = vsel %vm479, %v669, -inf
        %682 = vmax.xlane.f32.xlu0 %v681
        %v683 = vpop.xlane.xlu0 %682
        %v684 = vsel %vm479, %v670, -inf
        %685 = vmax.xlane.f32.xlu0 %v684
        %v686 = vpop.xlane.xlu0 %685
        %v687 = vsel %vm479, %v671, -inf
        %688 = vmax.xlane.f32.xlu0 %v687
        %v689 = vpop.xlane.xlu0 %688
        %v690 = vsel %vm479, %v672, -inf
        %691 = vmax.xlane.f32.xlu0 %v690
        %v692 = vpop.xlane.xlu0 %691
        %v693 = vsel %vm479, %v673, -inf
        %694 = vmax.xlane.f32.xlu0 %v693
        %v695 = vpop.xlane.xlu0 %694
        %v696 = vsel %vm479, %v674, -inf
        %697 = vmax.xlane.f32.xlu0 %v696
        %v698 = vpop.xlane.xlu0 %697
        %v699 = vsub.f32 %v667, %v677
        %v700 = vsub.f32 %v668, %v680
        %v701 = vsub.f32 %v669, %v683
        %v702 = vsub.f32 %v670, %v686
        %v703 = vsub.f32 %v671, %v689
        %v704 = vsub.f32 %v672, %v692
        %v705 = vsub.f32 %v673, %v695
        %v706 = vsub.f32 %v674, %v698
        %v707 = vmul.f32 %v699, 1.442695
        %v708 = vpow.pop %v707
        %v709 = vmul.f32 %v700, 1.442695
        %v710 = vpow.pop %v709
        %v711 = vmul.f32 %v701, 1.442695
        %v712 = vpow.pop %v711
        %v713 = vmul.f32 %v702, 1.442695
        %v714 = vpow.pop %v713
        %v715 = vmul.f32 %v703, 1.442695
        %v716 = vpow.pop %v715
        %v717 = vmul.f32 %v704, 1.442695
        %v718 = vpow.pop %v717
        %v719 = vmul.f32 %v705, 1.442695
        %v720 = vpow.pop %v719
        %v721 = vmul.f32 %v706, 1.442695
        %v722 = vpow.pop %v721
        %v723 = vsel %vm479, %v708, 0.0
        %724 = vadd.xlane.f32.xlu0 %v723
        %v725 = vpop.xlane.xlu0 %724
        %v726 = vsel %vm479, %v710, 0.0
        %727 = vadd.xlane.f32.xlu0 %v726
        %v728 = vpop.xlane.xlu0 %727
        %v729 = vsel %vm479, %v712, 0.0
        %730 = vadd.xlane.f32.xlu0 %v729
        %v731 = vpop.xlane.xlu0 %730
        %v732 = vsel %vm479, %v714, 0.0
        %733 = vadd.xlane.f32.xlu0 %v732
        %v734 = vpop.xlane.xlu0 %733
        %v735 = vsel %vm479, %v716, 0.0
        %736 = vadd.xlane.f32.xlu0 %v735
        %v737 = vpop.xlane.xlu0 %736
        %v738 = vsel %vm479, %v718, 0.0
        %739 = vadd.xlane.f32.xlu0 %v738
        %v740 = vpop.xlane.xlu0 %739
        %v741 = vsel %vm479, %v720, 0.0
        %742 = vadd.xlane.f32.xlu0 %v741
        %v743 = vpop.xlane.xlu0 %742
        %v744 = vsel %vm479, %v722, 0.0
        %745 = vadd.xlane.f32.xlu0 %v744
        %v746 = vpop.xlane.xlu0 %745
        %v747 = vrcp.pop %v725
        %v748 = vrcp.pop %v728
        %v749 = vrcp.pop %v731
        %v750 = vrcp.pop %v734
        %v751 = vrcp.pop %v737
        %v752 = vrcp.pop %v740
        %v753 = vrcp.pop %v743
        %v754 = vrcp.pop %v746
        %v755 = vmul.f32 %v708, %v747
        %v756 = vmul.f32 %v710, %v748
        %v757 = vmul.f32 %v712, %v749
        %v758 = vmul.f32 %v714, %v750
        %v759 = vmul.f32 %v716, %v751
        %v760 = vmul.f32 %v718, %v752
        %v761 = vmul.f32 %v720, %v753
        %v762 = vmul.f32 %v722, %v754
        %v763 = vpack.c.bf16 %v755, %v755
        %v764 = vpack.c.bf16 %v756, %v756
        %v765 = vpack.c.bf16 %v757, %v757
        %v766 = vpack.c.bf16 %v758, %v758
        %v767 = vpack.c.bf16 %v759, %v759
        %v768 = vpack.c.bf16 %v760, %v760
        %v769 = vpack.c.bf16 %v761, %v761
        %v770 = vpack.c.bf16 %v762, %v762
        %771 = vrot.lane.b32.xlu0 %v476, 64
        %v772 = vpop.permute.xlu0 %771
        %v774 = vsel %vm479, %v763, 0
        %vm776 = vcmask 1043456
        %v778 = vsel %vm776, %v772, 0
        %780 = vmatpush.bf16.msra.mxu0 0
        %781 = vmatpush.bf16.msra.mxu0 0
        %782 = vmatpush.bf16.msra.mxu0 0
        %783 = vmatpush.bf16.msra.mxu0 0
        %784 = vmatpush.bf16.msra.mxu0 0
        %785 = vmatpush.bf16.msra.mxu0 0
        %786 = vmatpush.bf16.msra.mxu0 0
        %787 = vmatpush.bf16.msra.mxu0 %v778
        %788 = vmatmul.bf16.gmra.mxu0 %v774
        %v789 = vpop.f32.mrf.mxu0
        %v790 = vadd.f32 0.0, %v789
        %v791 = vpop.f32.mrf.mxu0
        %792 = vdwg.mxu0
        %793 = vrot.lane.b32.xlu0 %v501, 64
        %v794 = vpop.permute.xlu0 %793
        %v796 = vsel %vm479, %v764, 0
        %v799 = vsel %vm776, %v794, 0
        %801 = vmatpush.bf16.msra.mxu0 0
        %802 = vmatpush.bf16.msra.mxu0 0
        %803 = vmatpush.bf16.msra.mxu0 0
        %804 = vmatpush.bf16.msra.mxu0 0
        %805 = vmatpush.bf16.msra.mxu0 0
        %806 = vmatpush.bf16.msra.mxu0 0
        %807 = vmatpush.bf16.msra.mxu0 0
        %808 = vmatpush.bf16.msra.mxu0 %v799
        %809 = vmatmul.bf16.gmra.mxu0 %v796
        %v810 = vpop.f32.mrf.mxu0
        %v811 = vadd.f32 0.0, %v810
        %v812 = vpop.f32.mrf.mxu0
        %813 = vdwg.mxu0
        %814 = vrot.lane.b32.xlu0 %v525, 64
        %v815 = vpop.permute.xlu0 %814
        %v817 = vsel %vm479, %v765, 0
        %v820 = vsel %vm776, %v815, 0
        %822 = vmatpush.bf16.msra.mxu0 0
        %823 = vmatpush.bf16.msra.mxu0 0
        %824 = vmatpush.bf16.msra.mxu0 0
        %825 = vmatpush.bf16.msra.mxu0 0
        %826 = vmatpush.bf16.msra.mxu0 0
        %827 = vmatpush.bf16.msra.mxu0 0
        %828 = vmatpush.bf16.msra.mxu0 0
        %829 = vmatpush.bf16.msra.mxu0 %v820
        %830 = vmatmul.bf16.gmra.mxu0 %v817
        %v831 = vpop.f32.mrf.mxu0
        %v832 = vadd.f32 0.0, %v831
        %v833 = vpop.f32.mrf.mxu0
        %834 = vdwg.mxu0
        %835 = vrot.lane.b32.xlu0 %v549, 64
        %v836 = vpop.permute.xlu0 %835
        %v838 = vsel %vm479, %v766, 0
        %v841 = vsel %vm776, %v836, 0
        %843 = vmatpush.bf16.msra.mxu0 0
        %844 = vmatpush.bf16.msra.mxu0 0
        %845 = vmatpush.bf16.msra.mxu0 0
        %846 = vmatpush.bf16.msra.mxu0 0
        %847 = vmatpush.bf16.msra.mxu0 0
        %848 = vmatpush.bf16.msra.mxu0 0
        %849 = vmatpush.bf16.msra.mxu0 0
        %850 = vmatpush.bf16.msra.mxu0 %v841
        %851 = vmatmul.bf16.gmra.mxu0 %v838
        %v852 = vpop.f32.mrf.mxu0
        %v853 = vadd.f32 0.0, %v852
        %v854 = vpop.f32.mrf.mxu0
        %855 = vdwg.mxu0
        %856 = vrot.lane.b32.xlu0 %v573, 64
        %v857 = vpop.permute.xlu0 %856
        %v859 = vsel %vm479, %v767, 0
        %v862 = vsel %vm776, %v857, 0
        %864 = vmatpush.bf16.msra.mxu0 0
        %865 = vmatpush.bf16.msra.mxu0 0
        %866 = vmatpush.bf16.msra.mxu0 0
        %867 = vmatpush.bf16.msra.mxu0 0
        %868 = vmatpush.bf16.msra.mxu0 0
        %869 = vmatpush.bf16.msra.mxu0 0
        %870 = vmatpush.bf16.msra.mxu0 0
        %871 = vmatpush.bf16.msra.mxu0 %v862
        %872 = vmatmul.bf16.gmra.mxu0 %v859
        %v873 = vpop.f32.mrf.mxu0
        %v874 = vadd.f32 0.0, %v873
        %v875 = vpop.f32.mrf.mxu0
        %876 = vdwg.mxu0
        %877 = vrot.lane.b32.xlu0 %v597, 64
        %v878 = vpop.permute.xlu0 %877
        %v880 = vsel %vm479, %v768, 0
        %v883 = vsel %vm776, %v878, 0
        %885 = vmatpush.bf16.msra.mxu0 0
        %886 = vmatpush.bf16.msra.mxu0 0
        %887 = vmatpush.bf16.msra.mxu0 0
        %888 = vmatpush.bf16.msra.mxu0 0
        %889 = vmatpush.bf16.msra.mxu0 0
        %890 = vmatpush.bf16.msra.mxu0 0
        %891 = vmatpush.bf16.msra.mxu0 0
        %892 = vmatpush.bf16.msra.mxu0 %v883
        %893 = vmatmul.bf16.gmra.mxu0 %v880
        %v894 = vpop.f32.mrf.mxu0
        %v895 = vadd.f32 0.0, %v894
        %v896 = vpop.f32.mrf.mxu0
        %897 = vdwg.mxu0
        %898 = vrot.lane.b32.xlu0 %v621, 64
        %v899 = vpop.permute.xlu0 %898
        %v901 = vsel %vm479, %v769, 0
        %v904 = vsel %vm776, %v899, 0
        %906 = vmatpush.bf16.msra.mxu0 0
        %907 = vmatpush.bf16.msra.mxu0 0
        %908 = vmatpush.bf16.msra.mxu0 0
        %909 = vmatpush.bf16.msra.mxu0 0
        %910 = vmatpush.bf16.msra.mxu0 0
        %911 = vmatpush.bf16.msra.mxu0 0
        %912 = vmatpush.bf16.msra.mxu0 0
        %913 = vmatpush.bf16.msra.mxu0 %v904
        %914 = vmatmul.bf16.gmra.mxu0 %v901
        %v915 = vpop.f32.mrf.mxu0
        %v916 = vadd.f32 0.0, %v915
        %v917 = vpop.f32.mrf.mxu0
        %918 = vdwg.mxu0
        %919 = vrot.lane.b32.xlu0 %v645, 64
        %v920 = vpop.permute.xlu0 %919
        %v922 = vsel %vm479, %v770, 0
        %v925 = vsel %vm776, %v920, 0
        %927 = vmatpush.bf16.msra.mxu0 0
        %928 = vmatpush.bf16.msra.mxu0 0
        %929 = vmatpush.bf16.msra.mxu0 0
        %930 = vmatpush.bf16.msra.mxu0 0
        %931 = vmatpush.bf16.msra.mxu0 0
        %932 = vmatpush.bf16.msra.mxu0 0
        %933 = vmatpush.bf16.msra.mxu0 0
        %934 = vmatpush.bf16.msra.mxu0 %v925
        %935 = vmatmul.bf16.gmra.mxu0 %v922
        %v936 = vpop.f32.mrf.mxu0
        %v937 = vadd.f32 0.0, %v936
        %v938 = vpop.f32.mrf.mxu0
        %939 = vdwg.mxu0
        %942 = vrot.lane.b32.xlu0 %v832, 8
        %v943 = vpop.permute.xlu0 %942
        %944 = vrot.lane.b32.xlu0 %v853, 8
        %v945 = vpop.permute.xlu0 %944
        %950 = vrot.lane.b32.xlu0 %v874, 16
        %v951 = vpop.permute.xlu0 %950
        %952 = vrot.lane.b32.xlu0 %v895, 16
        %v953 = vpop.permute.xlu0 %952
        %958 = vrot.lane.b32.xlu0 %v916, 24
        %v959 = vpop.permute.xlu0 %958
        %960 = vrot.lane.b32.xlu0 %v937, 24
        %v961 = vpop.permute.xlu0 %960
        %v964 = vsel %vm479, %v790, %v943
        %v965 = vsel %vm479, %v811, %v945
        %vm966 = vcmask 130048
        %v967 = vsel %vm966, %v964, %v951
        %v968 = vsel %vm966, %v965, %v953
        %vm969 = vcmask 195584
        %v970 = vsel %vm969, %v967, %v959
        %v971 = vsel %vm969, %v968, %v961
        %v972 = vpack.c.bf16 %v971, %v970
        %v973 = vperm.slane %v413, 1
        %v978 = vunpack.c.l.b16 %v397
        %v979 = vunpack.c.l.b16 %v398
        %v980 = vunpack.c.l.b16 %v399
        %v981 = vunpack.c.l.b16 %v400
        %v982 = vpack.c.b16 %v979, %v978
        %v983 = vpack.c.b16 %v981, %v980
        %v987 = vsel %vm428, %v972, 0
        %989 = vmatpush.bf16.msra.mxu0 0
        %990 = vmatpush.bf16.msra.mxu0 0
        %991 = vmatpush.bf16.msra.mxu0 0
        %992 = vmatpush.bf16.msra.mxu0 0
        %993 = vmatpush.bf16.msra.mxu0 0
        %994 = vmatpush.bf16.msra.mxu0 0
        %995 = vmatpush.bf16.msra.mxu0 %v983
        %996 = vmatpush.bf16.msra.mxu0 %v982
        %997 = vmatmul.bf16.gmra.mxu0 %v987
        %v998 = vpop.f32.mrf.mxu0
        %v999 = vadd.f32 %v973, %v998
        %v1000 = vpop.f32.mrf.mxu0
        %v1001 = vadd.f32 %v973, %v1000
        %1002 = vdwg.mxu0
        %v1003 = vadd.f32 %v391, %v999
        %v1004 = vadd.f32 %v392, %v1001
        %v1005 = vsel %vm428, %v1003, 0.0
        %1006 = vadd.xlane.f32.xlu0 %v1005
        %v1007 = vpop.xlane.xlu0 %1006
        %v1008 = vsel %vm428, %v1004, 0.0
        %1009 = vadd.xlane.f32.xlu0 %v1008
        %v1010 = vpop.xlane.xlu0 %1009
        %v1011 = vrcp.pop 32.0
        %v1012 = vmul.f32 32.0, %v1011
        %v1013 = vsub.f32 1.0, %v1012
        %v1014 = vmul.f32 %v1011, %v1013
        %v1015 = vadd.f32 %v1011, %v1014
        %vm1016 = vweird.f32 %v1011
        %v1017 = vsel %vm1016, %v1011, %v1015
        %v1018 = vmul.f32 %v1007, %v1017
        %v1019 = vmul.f32 %v1010, %v1017
        %v1020 = vsub.f32 %v1003, %v1018
        %v1021 = vsub.f32 %v1004, %v1019
        %v1022 = vmul.f32 %v1020, %v1020
        %v1023 = vmul.f32 %v1021, %v1021
        %v1024 = vsel %vm428, %v1022, 0.0
        %1025 = vadd.xlane.f32.xlu0 %v1024
        %v1026 = vpop.xlane.xlu0 %1025
        %v1027 = vsel %vm428, %v1023, 0.0
        %1028 = vadd.xlane.f32.xlu0 %v1027
        %v1029 = vpop.xlane.xlu0 %1028
        %v1030 = vmul.f32 %v1026, %v1017
        %v1031 = vmul.f32 %v1029, %v1017
        %v1032 = vadd.f32 %v1030, 1e-05
        %v1033 = vadd.f32 %v1031, 1e-05
        %v1034 = vrsqrt.pop %v1032
        %v1035 = vmul.f32 %v1034, %v1032
        %v1036 = vmul.f32 %v1035, %v1034
        %v1037 = vmul.f32 0.5, %v1036
        %v1038 = vsub.f32 1.5, %v1037
        %v1039 = vmul.f32 %v1034, %v1038
        %vm1040 = vweird.f32 %v1032
        %vm1041 = vweird.f32 %v1034
        %vm1042 = vmor %vm1040, %vm1041
        %v1043 = vsel %vm1042, %v1034, %v1039
        %v1044 = vrsqrt.pop %v1033
        %v1045 = vmul.f32 %v1044, %v1033
        %v1046 = vmul.f32 %v1045, %v1044
        %v1047 = vmul.f32 0.5, %v1046
        %v1048 = vsub.f32 1.5, %v1047
        %v1049 = vmul.f32 %v1044, %v1048
        %vm1050 = vweird.f32 %v1033
        %vm1051 = vweird.f32 %v1044
        %vm1052 = vmor %vm1050, %vm1051
        %v1053 = vsel %vm1052, %v1044, %v1049
        %v1054 = vmul.f32 %v1020, %v1043
        %v1055 = vmul.f32 %v1021, %v1053
        %v1056 = vperm.slane %v413, 4
        %v1057 = vmul.f32 %v1054, %v1056
        %v1058 = vmul.f32 %v1055, %v1056
        %v1059 = vperm.slane %v413, 5
        %v1060 = vadd.f32 %v1057, %v1059
        %v1061 = vadd.f32 %v1058, %v1059
        %v1062 = vpack.c.bf16 %v1061, %v1060
        %v1063 = vperm.slane %v413, 2
        %v1068 = vunpack.c.l.b16 %v401
        %v1069 = vunpack.c.l.b16 %v402
        %v1070 = vunpack.c.l.b16 %v403
        %v1071 = vunpack.c.l.b16 %v404
        %v1072 = vpack.c.b16 %v1069, %v1068
        %v1073 = vpack.c.b16 %v1071, %v1070
        %v1077 = vsel %vm428, %v1062, 0
        %1079 = vmatpush.bf16.msra.mxu0 0
        %1080 = vmatpush.bf16.msra.mxu0 0
        %1081 = vmatpush.bf16.msra.mxu0 0
        %1082 = vmatpush.bf16.msra.mxu0 0
        %1083 = vmatpush.bf16.msra.mxu0 0
        %1084 = vmatpush.bf16.msra.mxu0 0
        %1085 = vmatpush.bf16.msra.mxu0 %v1073
        %1086 = vmatpush.bf16.msra.mxu0 %v1072
        %1087 = vmatmul.bf16.gmra.mxu0 %v1077
        %v1088 = vpop.f32.mrf.mxu0
        %v1089 = vadd.f32 %v1063, %v1088
        %v1090 = vpop.f32.mrf.mxu0
        %v1091 = vadd.f32 %v1063, %v1090
        %1092 = vdwg.mxu0
        %v1093 = vmax.f32 %v1089, 0.0
        %v1094 = vmax.f32 %v1091, 0.0
        %v1095 = vpack.c.bf16 %v1094, %v1093
        %v1096 = vperm.slane %v413, 3
        %v1105 = vunpack.c.l.b16 %v405
        %v1106 = vunpack.c.l.b16 %v406
        %v1107 = vunpack.c.l.b16 %v407
        %v1108 = vunpack.c.l.b16 %v408
        %v1109 = vunpack.c.l.b16 %v409
        %v1110 = vunpack.c.l.b16 %v410
        %v1111 = vunpack.c.l.b16 %v411
        %v1112 = vunpack.c.l.b16 %v412
        %v1113 = vpack.c.b16 %v1106, %v1105
        %v1114 = vpack.c.b16 %v1108, %v1107
        %v1115 = vpack.c.b16 %v1110, %v1109
        %v1116 = vpack.c.b16 %v1112, %v1111
        %vm1121 = vcmask 523264
        %v1123 = vsel %vm1121, %v1095, 0
        %1125 = vmatpush.bf16.msra.mxu0 0
        %1126 = vmatpush.bf16.msra.mxu0 0
        %1127 = vmatpush.bf16.msra.mxu0 0
        %1128 = vmatpush.bf16.msra.mxu0 0
        %1129 = vmatpush.bf16.msra.mxu0 %v1116
        %1130 = vmatpush.bf16.msra.mxu0 %v1115
        %1131 = vmatpush.bf16.msra.mxu0 %v1114
        %1132 = vmatpush.bf16.msra.mxu0 %v1113
        %1133 = vmatmul.bf16.gmra.mxu0 %v1123
        %v1134 = vpop.f32.mrf.mxu0
        %v1135 = vadd.f32 %v1096, %v1134
        %v1136 = vpop.f32.mrf.mxu0
        %v1137 = vadd.f32 %v1096, %v1136
        %1138 = vdwg.mxu0
        %v1139 = vadd.f32 %v1060, %v1135
        %v1140 = vadd.f32 %v1061, %v1137
        %v1141 = vsel %vm428, %v1139, 0.0
        %1142 = vadd.xlane.f32.xlu0 %v1141
        %v1143 = vpop.xlane.xlu0 %1142
        %v1144 = vsel %vm428, %v1140, 0.0
        %1145 = vadd.xlane.f32.xlu0 %v1144
        %v1146 = vpop.xlane.xlu0 %1145
        %v1147 = vmul.f32 %v1143, %v1017
        %v1148 = vmul.f32 %v1146, %v1017
        %v1149 = vsub.f32 %v1139, %v1147
        %v1150 = vsub.f32 %v1140, %v1148
        %v1151 = vmul.f32 %v1149, %v1149
        %v1152 = vmul.f32 %v1150, %v1150
        %v1153 = vsel %vm428, %v1151, 0.0
        %1154 = vadd.xlane.f32.xlu0 %v1153
        %v1155 = vpop.xlane.xlu0 %1154
        %v1156 = vsel %vm428, %v1152, 0.0
        %1157 = vadd.xlane.f32.xlu0 %v1156
        %v1158 = vpop.xlane.xlu0 %1157
        %v1159 = vmul.f32 %v1155, %v1017
        %v1160 = vmul.f32 %v1158, %v1017
        %v1161 = vadd.f32 %v1159, 1e-05
        %v1162 = vadd.f32 %v1160, 1e-05
        %v1163 = vrsqrt.pop %v1161
        %v1164 = vmul.f32 %v1163, %v1161
        %v1165 = vmul.f32 %v1164, %v1163
        %v1166 = vmul.f32 0.5, %v1165
        %v1167 = vsub.f32 1.5, %v1166
        %v1168 = vmul.f32 %v1163, %v1167
        %vm1169 = vweird.f32 %v1161
        %vm1170 = vweird.f32 %v1163
        %vm1171 = vmor %vm1169, %vm1170
        %v1172 = vsel %vm1171, %v1163, %v1168
        %v1173 = vrsqrt.pop %v1162
        %v1174 = vmul.f32 %v1173, %v1162
        %v1175 = vmul.f32 %v1174, %v1173
        %v1176 = vmul.f32 0.5, %v1175
        %v1177 = vsub.f32 1.5, %v1176
        %v1178 = vmul.f32 %v1173, %v1177
        %vm1179 = vweird.f32 %v1162
        %vm1180 = vweird.f32 %v1173
        %vm1181 = vmor %vm1179, %vm1180
        %v1182 = vsel %vm1181, %v1173, %v1178
        %v1183 = vmul.f32 %v1149, %v1172
        %v1184 = vmul.f32 %v1150, %v1182
        %v1185 = vperm.slane %v413, 6
        %v1186 = vmul.f32 %v1183, %v1185
        %v1187 = vmul.f32 %v1184, %v1185
        %v1188 = vperm.slane %v413, 7
        %v1189 = vadd.f32 %v1186, %v1188
        %v1190 = vadd.f32 %v1187, %v1188
        %1191 = vst.msk [vmem:[#allocation2] sm:$0xff] %vm428, %v1189
        %1192 = vst.msk [vmem:[#allocation2 + $0x8] sm:$0xff] %vm428, %v1190
        %p1193 = scmp.eq.s32.totalorder %s23, 1
        // Predicated region
        $region61: #{tpu_custom_call.1} parent=47 // pred_check
          %p1194 = pneg %p1193
        $region62: #{tpu_custom_call.1} parent=47 // pred_check_branch
          %1196 = sbr.rel (%p1194) target = $region64
        $region63: #{tpu_custom_call.1} parent=47 // pred_region
          %v1197 = vld [vmem:[%s6] sm:$0x1]
          %v1198 = vld [vmem:[%s6 + $0x1] sm:$0x1]
          %v1199 = vsel %vm428, %v1189, 0.0
          %1200 = vadd.xlane.f32.xlu0 %v1199
          %v1201 = vpop.xlane.xlu0 %1200
          %v1202 = vsel %vm428, %v1190, 0.0
          %1203 = vadd.xlane.f32.xlu0 %v1202
          %v1204 = vpop.xlane.xlu0 %1203
          %v1205 = vmul.f32 %v1201, %v1017
          %v1206 = vmul.f32 %v1204, %v1017
          %v1207 = vsub.f32 %v1189, %v1205
          %v1208 = vsub.f32 %v1190, %v1206
          %v1209 = vmul.f32 %v1207, %v1207
          %v1210 = vmul.f32 %v1208, %v1208
          %v1211 = vsel %vm428, %v1209, 0.0
          %1212 = vadd.xlane.f32.xlu0 %v1211
          %v1213 = vpop.xlane.xlu0 %1212
          %v1214 = vsel %vm428, %v1210, 0.0
          %1215 = vadd.xlane.f32.xlu0 %v1214
          %v1216 = vpop.xlane.xlu0 %1215
          %v1217 = vmul.f32 %v1213, %v1017
          %v1218 = vmul.f32 %v1216, %v1017
          %v1219 = vadd.f32 %v1217, 1e-05
          %v1220 = vadd.f32 %v1218, 1e-05
          %v1221 = vrsqrt.pop %v1219
          %v1222 = vmul.f32 %v1221, %v1219
          %v1223 = vmul.f32 %v1222, %v1221
          %v1224 = vmul.f32 0.5, %v1223
          %v1225 = vsub.f32 1.5, %v1224
          %v1226 = vmul.f32 %v1221, %v1225
          %vm1227 = vweird.f32 %v1219
          %vm1228 = vweird.f32 %v1221
          %vm1229 = vmor %vm1227, %vm1228
          %v1230 = vsel %vm1229, %v1221, %v1226
          %v1231 = vrsqrt.pop %v1220
          %v1232 = vmul.f32 %v1231, %v1220
          %v1233 = vmul.f32 %v1232, %v1231
          %v1234 = vmul.f32 0.5, %v1233
          %v1235 = vsub.f32 1.5, %v1234
          %v1236 = vmul.f32 %v1231, %v1235
          %vm1237 = vweird.f32 %v1220
          %vm1238 = vweird.f32 %v1231
          %vm1239 = vmor %vm1237, %vm1238
          %v1240 = vsel %vm1239, %v1231, %v1236
          %v1241 = vmul.f32 %v1207, %v1230
          %v1242 = vmul.f32 %v1208, %v1240
          %v1243 = vperm.slane %v1197, 0
          %v1244 = vmul.f32 %v1241, %v1243
          %v1245 = vmul.f32 %v1242, %v1243
          %v1246 = vperm.slane %v1198, 0
          %v1247 = vadd.f32 %v1244, %v1246
          %v1248 = vadd.f32 %v1245, %v1246
          %v1251 = vrot.slane %v1247, 4
          %v1252 = vrot.slane %v1248, 4
          %v1253 = vperm.slane %v1247, 0
          %v1254 = vperm.slane %v1251, 0
          %v1255 = vperm.slane %v1248, 0
          %v1256 = vperm.slane %v1252, 0
          %vm1257 = vcmask 1041409
          %v1258 = vsel %vm1257, %v1254, %v1253
          %vm1259 = vcmask 1042434
          %v1260 = vsel %vm1259, %v1255, %v1258
          %vm1261 = vcmask 1043459
          %v1262 = vsel %vm1261, %v1256, %v1260
          %v1264 = vperm.slane %v1247, 1
          %v1265 = vperm.slane %v1251, 1
          %v1266 = vperm.slane %v1248, 1
          %v1267 = vperm.slane %v1252, 1
          %v1268 = vsel %vm1257, %v1265, %v1264
          %v1269 = vsel %vm1259, %v1266, %v1268
          %v1270 = vsel %vm1261, %v1267, %v1269
          %1271 = vrot.lane.b32.xlu0 %v1270, 32
          %v1272 = vpop.permute.xlu0 %1271
          %v1274 = vperm.slane %v1247, 2
          %v1275 = vperm.slane %v1251, 2
          %v1276 = vperm.slane %v1248, 2
          %v1277 = vperm.slane %v1252, 2
          %v1278 = vsel %vm1257, %v1275, %v1274
          %v1279 = vsel %vm1259, %v1276, %v1278
          %v1280 = vsel %vm1261, %v1277, %v1279
          %1281 = vrot.lane.b32.xlu0 %v1280, 64
          %v1282 = vpop.permute.xlu0 %1281
          %v1284 = vperm.slane %v1247, 3
          %v1285 = vperm.slane %v1251, 3
          %v1286 = vperm.slane %v1248, 3
          %v1287 = vperm.slane %v1252, 3
          %v1288 = vsel %vm1257, %v1285, %v1284
          %v1289 = vsel %vm1259, %v1286, %v1288
          %v1290 = vsel %vm1261, %v1287, %v1289
          %1291 = vrot.lane.b32.xlu0 %v1290, 96
          %v1292 = vpop.permute.xlu0 %1291
          %v1294 = vsel %vm428, %v1262, %v1272
          %v1295 = vsel %vm1121, %v1294, %v1282
          %vm1296 = vcmask 785408
          %v1297 = vsel %vm1296, %v1295, %v1292
          %1298 = vst [vmem:[#allocation8] sm:$0xf] %v1297
        $region64: #{tpu_custom_call.1} parent=47 // pred_fallthru
          _
        // Predicated region
        $region65: #{tpu_custom_call.1} parent=47 // pred_check
          %p1299 = pneg %p208
        $region66: #{tpu_custom_call.1} parent=47 // pred_check_branch
          %1301 = sbr.rel (%p1299) target = $region68
        $region67: #{tpu_custom_call.1} parent=47 // pred_region
          %1303 = vsyncadd [#allocation5], 0
          %s1305 = sshll.u32 [#allocation8], 4
          %s1306 = int_to_ptr.vmem [resolvable:$true] %s1305
          %s1307 = sshll.u32 %s7, 4
          %s1308 = int_to_ptr.hbm [resolvable:$true] %s1307
          %1310 = dma.vmem_to_hbm [thread:$0]  %s1306, 64, %s1308, [#allocation5]
        $region68: #{tpu_custom_call.1} parent=47 // pred_fallthru
          _
        // Predicated region
        $region69: #{tpu_custom_call.1} parent=47 // pred_check
          %p1311 = pneg %p208
        $region70: #{tpu_custom_call.1} parent=47 // pred_check_branch
          %1313 = sbr.rel (%p1311) target = $region72
        $region71: #{tpu_custom_call.1} parent=47 // pred_region
          %1315 = dma.done [#allocation5], 64
        $region72: #{tpu_custom_call.1} parent=47 // pred_fallthru
          _
      $region48: #{tpu_custom_call.1} parent=5 // pred_fallthru
        _
      %p1316 = scmp.le.s32.totalorder 2, %s18
      // Predicated region
      $region73: #{tpu_custom_call.1} parent=5 // pred_check
        %p1317 = pneg %p1316
      $region74: #{tpu_custom_call.1} parent=5 // pred_check_branch
        %1319 = sbr.rel (%p1317) target = $region76
      $region75: #{tpu_custom_call.1} parent=5 // pred_region
        %s1320 = ssub.s32 %s18, 2
      $region76: #{tpu_custom_call.1} parent=5 // pred_fallthru
        _
    $region6: #{tpu_custom_call.1} parent=1 // loop_footer
      %s22 = sadd.s32 1, %s18
    $region7: #{tpu_custom_call.1} parent=1 // loop_footer_branch
      %17 = sbr.rel target = $region3
    $region8: #{tpu_custom_call.1} parent=1 // loop_exit
      _
    %1321 = vsyncpa [#allocation4], 1
    %s1322 = scalar_lea.sflag [#allocation4], 1
    %1323 = vsyncpa %s1322, 1
    %1324 = vsyncpa [#allocation7], 1
    %s1325 = scalar_lea.sflag [#allocation7], 1
    %1326 = vsyncpa %s1325, 1
    %1327 = vsyncpa [#allocation5], 1
    %s1328 = scalar_lea.sflag [#allocation5], 1
    %1329 = vsyncpa %s1328, 1

</llo_original>
